<compile_context>
chip_gen: v7x
topology: tpu7x:2x2x1
jax: 0.10.0
libtpu: 0.0.40
codegen_flags: <defaults>
</compile_context>

<pallas_src>
import math
import jax
import jax.numpy as jnp
from jax.experimental import pallas as pl
from jax.experimental.pallas import tpu as pltpu

# ---- model / problem sizes ---------------------------------------------------
B = 8            # batch for the demo
IN_DIM = 16      # input_dim
HIDDEN = 32      # hidden_dim
NUM_HEADS = 4
HEAD_DIM = HIDDEN // NUM_HEADS
FF = HIDDEN * 4  # 128
NUM_LAYERS = 2
NUM_STATES = 4
S2 = NUM_STATES * NUM_STATES
LN_EPS = 1e-5
LANES = 128                      # lane-dense width for slabs / output
IN_W = IN_DIM + 3                # [x | t | 1_tok0 | 1_tok1] stacked input width

STATE_TRANSITIONS = {0: [1, 2], 1: [2, 3], 2: [3], 3: []}

# ---- constant-slab row offsets (multi-row blocks are 8-aligned) --------------
EMB_OFF = 0                                  # IN_W rows      (lanes 0:HIDDEN)
SEL_OFF = 24                                 # HIDDEN rows    (lanes 0:NUM_HEADS), scale folded
SELT_OFF = SEL_OFF + HIDDEN                  # 56: NUM_HEADS rows (lanes 0:HIDDEN)
WOUT_OFF = 64                                # HIDDEN rows    (lanes 0:LANES)
BOUT_OFF = WOUT_OFF + HIDDEN                 # 96: 1 row
MASK_OFF = BOUT_OFF + 1                      # 97: 1 row (zero beyond lane S2-1 -> kills softplus(0) pad)
RD_OFF = 104                                 # LANES rows: RD = I - rmat@dmat (zero-padded)
BIAS_OFF = RD_OFF + LANES                    # 232: NUM_LAYERS * 8 per-layer bias/LN rows
CONST_ROWS = BIAS_OFF + NUM_LAYERS * 8       # 248


def _layernorm(v, g, b):
    mu = jnp.mean(v, axis=-1, keepdims=True)
    var = jnp.mean((v - mu) ** 2, axis=-1, keepdims=True)
    return (v - mu) * jax.lax.rsqrt(var + LN_EPS) * g + b


# ----------------------------- the Pallas kernel -----------------------------
def attention_intensity_kernel(xin_ref, wbig_ref, wow2_ref, const_ref, out_ref):
    f32 = jnp.float32
    dot = lambda a, b: jnp.dot(a, b, preferred_element_type=f32)
    Bt = out_ref.shape[0]                      # batch-tile rows (multiple of 8)

    # ---- constants from the packed slab -------------------------------------
    w_emb = const_ref[EMB_OFF:EMB_OFF + IN_W, 0:HIDDEN]            # [IN_W, H]
    sel_s = const_ref[SEL_OFF:SEL_OFF + HIDDEN, 0:NUM_HEADS]       # [H, NH], 1/sqrt(hd) folded
    selT  = const_ref[SELT_OFF:SELT_OFF + NUM_HEADS, 0:HIDDEN]     # [NH, H]
    w_out = const_ref[WOUT_OFF:WOUT_OFF + HIDDEN, :]               # [H, 128]
    b_out = const_ref[BOUT_OFF:BOUT_OFF + 1, :]                    # [1, 128]
    mask  = const_ref[MASK_OFF:MASK_OFF + 1, :]                    # [1, 128]
    rd    = const_ref[RD_OFF:RD_OFF + LANES, :]                    # [128, 128]

    # tok0 = input_proj(x), tok1 = time_embedding(t); biases folded into w_emb
    tok = dot(xin_ref[...], w_emb)                                 # [2Bt, H]

    for l in range(NUM_LAYERS):                                    # static unroll
        wqkv = wbig_ref[l, :, 0:3 * HIDDEN]                        # [H, 96] = wq|wk|wv
        w1   = wbig_ref[l, :, LANES:LANES + FF]                    # [H, FF] (lane-aligned at 128)
        wo   = wow2_ref[l, 0:HIDDEN, :]                            # [H, H]
        w2   = wow2_ref[l, HIDDEN:HIDDEN + FF, :]                  # [FF, H]

        base = BIAS_OFF + 8 * l
        brow = lambda r: const_ref[base + r:base + r + 1, :]
        bqkv = brow(0)[:, 0:3 * HIDDEN]
        bo   = brow(1)[:, 0:HIDDEN]
        b1   = brow(2)[:, 0:FF]
        b2   = brow(3)[:, 0:HIDDEN]
        g1   = brow(4)[:, 0:HIDDEN]
        be1  = brow(5)[:, 0:HIDDEN]
        g2   = brow(6)[:, 0:HIDDEN]
        be2  = brow(7)[:, 0:HIDDEN]

        # --- fused q/k/v projection (one MXU push) ---------------------------
        qkv = dot(tok, wqkv) + bqkv                                # [2Bt, 96]
        q = qkv[:, 0:HIDDEN]                                       # [2Bt, H]
        k = qkv[:, HIDDEN:2 * HIDDEN]
        v = qkv[:, 2 * HIDDEN:3 * HIDDEN]

        # --- 2-token attention: closed-form softmax == per-head sigmoid ------
        kd = k[0:Bt] - k[Bt:2 * Bt]                                # k0 - k1, [Bt, H]
        vd = v[0:Bt] - v[Bt:2 * Bt]                                # v0 - v1
        v_tok1 = v[Bt:2 * Bt]
        kd2 = jnp.concatenate([kd, kd], axis=0)                    # [2Bt, H]
        vd2 = jnp.concatenate([vd, vd], axis=0)
        v12 = jnp.concatenate([v_tok1, v_tok1], axis=0)

        s = dot(q * kd2, sel_s)                                    # [2Bt, NH] per-head score diff
        w0 = 0.5 * (jnp.tanh(0.5 * s) + 1.0)                       # sigmoid (exact 2-key softmax), EUP
        wb = dot(w0, selT)                                         # broadcast weight back per head
        attn = dot(v12 + wb * vd2, wo) + bo                        # [2Bt, H]

        tok = _layernorm(tok + attn, g1, be1)                      # post-norm residual 1
        ff = dot(jnp.maximum(dot(tok, w1) + b1, 0.0), w2) + b2     # ReLU FFN (stacked tokens)
        tok = _layernorm(tok + ff, g2, be2)                        # post-norm residual 2

    # --- output head on token 0: lane-dense [Bt, 128] -------------------------
    h = tok[0:Bt]
    A = dot(h, w_out) + b_out
    A = jnp.maximum(A, 0.0) + jnp.log1p(jnp.exp(-jnp.abs(A)))      # stable softplus
    A = A * mask                                                   # transition mask (0 in pad lanes)
    out_ref[...] = dot(A, rd)                                      # RD folds diag(-rowsum)


# ------------------------------- params / packing -----------------------------
def build_params(key):
    ks = jax.random.split(key, 32)
    i = iter(range(32))

    def nrm(k, shape, fan_in):
        return jax.random.normal(k, shape, jnp.float32) / math.sqrt(fan_in)

    p = {}
    p["w_in"] = nrm(ks[next(i)], (IN_DIM, HIDDEN), IN_DIM)
    p["b_in"] = nrm(ks[next(i)], (1, HIDDEN), IN_DIM)
    p["w_t"] = nrm(ks[next(i)], (1, HIDDEN), 1)
    p["b_t"] = nrm(ks[next(i)], (1, HIDDEN), 1)

    def stack(shape, fan_in):
        return jnp.stack([nrm(ks[next(i)], shape, fan_in) for _ in range(NUM_LAYERS)])

    p["wq"] = stack((HIDDEN, HIDDEN), HIDDEN); p["bq"] = stack((1, HIDDEN), HIDDEN)
    p["wk"] = stack((HIDDEN, HIDDEN), HIDDEN); p["bk"] = stack((1, HIDDEN), HIDDEN)
    p["wv"] = stack((HIDDEN, HIDDEN), HIDDEN); p["bv"] = stack((1, HIDDEN), HIDDEN)
    p["wo"] = stack((HIDDEN, HIDDEN), HIDDEN); p["bo"] = stack((1, HIDDEN), HIDDEN)
    p["w1"] = stack((HIDDEN, FF), HIDDEN);     p["b1"] = stack((1, FF), HIDDEN)
    p["w2"] = stack((FF, HIDDEN), FF);         p["b2"] = stack((1, HIDDEN), FF)
    p["g1"] = jnp.ones((NUM_LAYERS, 1, HIDDEN), jnp.float32)
    p["be1"] = jnp.zeros((NUM_LAYERS, 1, HIDDEN), jnp.float32)
    p["g2"] = jnp.ones((NUM_LAYERS, 1, HIDDEN), jnp.float32)
    p["be2"] = jnp.zeros((NUM_LAYERS, 1, HIDDEN), jnp.float32)
    p["w_out"] = nrm(ks[next(i)], (HIDDEN, S2), HIDDEN)
    p["b_out"] = nrm(ks[next(i)], (1, S2), HIDDEN)
    return p


def build_constants():
    mask2d = jnp.zeros((NUM_STATES, NUM_STATES), jnp.float32)
    for f, tos in STATE_TRANSITIONS.items():
        for to in tos:
            mask2d = mask2d.at[f, to].set(1.0)

    # head-segment selector: sel[h, head] = 1 if lane h belongs to that head
    sel = jnp.zeros((HIDDEN, NUM_HEADS), jnp.float32)
    for h in range(NUM_HEADS):
        sel = sel.at[h * HEAD_DIM:(h + 1) * HEAD_DIM, h].set(1.0)
    selT = sel.T

    rmat = jnp.zeros((S2, NUM_STATES), jnp.float32)   # rmat[i*S+j, i] = 1
    dmat = jnp.zeros((NUM_STATES, S2), jnp.float32)   # dmat[i, i*S+i] = 1
    for si in range(NUM_STATES):
        for sj in range(NUM_STATES):
            rmat = rmat.at[si * NUM_STATES + sj, si].set(1.0)
        dmat = dmat.at[si, si * NUM_STATES + si].set(1.0)
    return mask2d, sel, selT, rmat, dmat


def pack_inputs(p, consts_raw):
    """Pack all weights/constants into 3 kernel slabs (done once, host side)."""
    mask2d, sel, selT, rmat, dmat = consts_raw
    scale = 1.0 / math.sqrt(HEAD_DIM)

    def pad_lanes(a, w):
        return jnp.pad(a, ((0, 0), (0, w - a.shape[1])))

    # embedding matmul weight [IN_W, H]: rows = w_in | w_t | b_in | b_t
    w_emb = jnp.concatenate([p["w_in"], p["w_t"], p["b_in"], p["b_t"]], axis=0)

    # wbig [L, H, 256]: lanes 0:96 = wq|wk|wv, lanes 128:256 = w1
    wbig = jnp.stack([
        jnp.concatenate([
            pad_lanes(jnp.concatenate([p["wq"][l], p["wk"][l], p["wv"][l]], axis=1), LANES),
            p["w1"][l]], axis=1)
        for l in range(NUM_LAYERS)])

    # wow2 [L, H+FF, H]: rows 0:H = wo, rows H:H+FF = w2
    wow2 = jnp.stack([jnp.concatenate([p["wo"][l], p["w2"][l]], axis=0)
                      for l in range(NUM_LAYERS)])

    # const slab [CONST_ROWS, 128]
    c = jnp.zeros((CONST_ROWS, LANES), jnp.float32)
    c = c.at[EMB_OFF:EMB_OFF + IN_W, 0:HIDDEN].set(w_emb)
    c = c.at[SEL_OFF:SEL_OFF + HIDDEN, 0:NUM_HEADS].set(sel * scale)   # scale folded
    c = c.at[SELT_OFF:SELT_OFF + NUM_HEADS, 0:HIDDEN].set(selT)
    c = c.at[WOUT_OFF:WOUT_OFF + HIDDEN, 0:S2].set(p["w_out"])
    c = c.at[BOUT_OFF, 0:S2].set(p["b_out"][0])
    c = c.at[MASK_OFF, 0:S2].set(mask2d.reshape(S2))
    rd = jnp.eye(S2, dtype=jnp.float32) - rmat @ dmat                  # folds diag(-rowsum)
    c = c.at[RD_OFF:RD_OFF + S2, 0:S2].set(rd)
    for l in range(NUM_LAYERS):
        base = BIAS_OFF + 8 * l
        c = c.at[base + 0, 0:3 * HIDDEN].set(
            jnp.concatenate([p["bq"][l][0], p["bk"][l][0], p["bv"][l][0]]))
        c = c.at[base + 1, 0:HIDDEN].set(p["bo"][l][0])
        c = c.at[base + 2, 0:FF].set(p["b1"][l][0])
        c = c.at[base + 3, 0:HIDDEN].set(p["b2"][l][0])
        c = c.at[base + 4, 0:HIDDEN].set(p["g1"][l][0])
        c = c.at[base + 5, 0:HIDDEN].set(p["be1"][l][0])
        c = c.at[base + 6, 0:HIDDEN].set(p["g2"][l][0])
        c = c.at[base + 7, 0:HIDDEN].set(p["be2"][l][0])

    return dict(wbig=wbig, wow2=wow2, consts=c)


# ------------------------------- wrapper / glue -------------------------------
def _choose_tile(bsz):
    """Large tiles to amortize per-step overhead; >=2 grid steps when possible
    so both v7x TensorCores get work; always a multiple of 8 (sublane align)."""
    assert bsz % 8 == 0, "batch must be a multiple of 8"
    if bsz <= 8:
        return bsz
    tile = max(8, min(512, (bsz // 2 // 8) * 8))
    while bsz % tile:
        tile -= 8
    return tile


def attention_intensity_forward(x, t, packed):
    bsz = x.shape[0]
    tile = _choose_tile(bsz)
    assert tile % 8 == 0          # keep sublane slices aligned (see review)
    nb = bsz // tile

    # stacked token-input slab: per batch tile, first `tile` rows are
    # [x | 0 | 1 | 0] (token 0) and the next `tile` rows are [0.. | t | 0 | 1].
    zeros1 = jnp.zeros((bsz, 1), jnp.float32)
    ones1 = jnp.ones((bsz, 1), jnp.float32)
    x_rows = jnp.concatenate([x, zeros1, ones1, zeros1], axis=1)           # [B, IN_W]
    t_rows = jnp.concatenate([jnp.zeros((bsz, IN_DIM), jnp.float32),
                              t, zeros1, ones1], axis=1)                   # [B, IN_W]
    xin = jnp.concatenate([x_rows.reshape(nb, tile, IN_W),
                           t_rows.reshape(nb, tile, IN_W)],
                          axis=1).reshape(nb * 2 * tile, IN_W)

    out_pad = pl.pallas_call(
        attention_intensity_kernel,
        out_shape=jax.ShapeDtypeStruct((bsz, LANES), jnp.float32),
        grid=(nb,),
        in_specs=[
            pl.BlockSpec((2 * tile, IN_W), lambda i: (i, 0)),
            pl.BlockSpec((NUM_LAYERS, HIDDEN, 2 * LANES), lambda i: (0, 0, 0)),
            pl.BlockSpec((NUM_LAYERS, HIDDEN + FF, HIDDEN), lambda i: (0, 0, 0)),
            pl.BlockSpec((CONST_ROWS, LANES), lambda i: (0, 0)),
        ],
        out_specs=pl.BlockSpec((tile, LANES), lambda i: (i, 0)),
        compiler_params=pltpu.CompilerParams(
            dimension_semantics=("parallel",)),
    )(xin, packed["wbig"], packed["wow2"], packed["consts"])
    return out_pad[:, :S2].reshape(bsz, NUM_STATES, NUM_STATES)


# ----------------------------- pure-JAX reference -----------------------------
def reference_forward(x, t, p, consts_raw):
    mask2d = consts_raw[0]
    tok0 = x @ p["w_in"] + p["b_in"][0]
    tok1 = t @ p["w_t"] + p["b_t"][0]
    seq = jnp.stack([tok0, tok1], axis=1)                 # [B, 2, H]

    def ln(v, g, b):
        mu = v.mean(-1, keepdims=True)
        var = ((v - mu) ** 2).mean(-1, keepdims=True)
        return (v - mu) / jnp.sqrt(var + LN_EPS) * g + b

    bsz = x.shape[0]
    for l in range(NUM_LAYERS):
        q = seq @ p["wq"][l] + p["bq"][l][0]
        k = seq @ p["wk"][l] + p["bk"][l][0]
        v = seq @ p["wv"][l] + p["bv"][l][0]
        sh = lambda u: u.reshape(bsz, 2, NUM_HEADS, HEAD_DIM).transpose(0, 2, 1, 3)
        qh, kh, vh = sh(q), sh(k), sh(v)
        sc = jnp.einsum("bhqd,bhkd->bhqk", qh, kh) / math.sqrt(HEAD_DIM)
        w = jax.nn.softmax(sc, axis=-1)
        o = jnp.einsum("bhqk,bhkd->bhqd", w, vh).transpose(0, 2, 1, 3).reshape(bsz, 2, HIDDEN)
        o = o @ p["wo"][l] + p["bo"][l][0]
        seq = ln(seq + o, p["g1"][l][0], p["be1"][l][0])
        f = jnp.maximum(seq @ p["w1"][l] + p["b1"][l][0], 0.0) @ p["w2"][l] + p["b2"][l][0]
        seq = ln(seq + f, p["g2"][l][0], p["be2"][l][0])

    h = seq[:, 0, :]
    A = (h @ p["w_out"] + p["b_out"][0]).reshape(bsz, NUM_STATES, NUM_STATES)
    A = jax.nn.softplus(A) * mask2d
    A_diag = -jnp.sum(A, axis=2)
    A = A + jnp.eye(NUM_STATES)[None] * A_diag[:, :, None]
    return A


if __name__ == "__main__":
    key = jax.random.PRNGKey(0)
    kx, kt, kp = jax.random.split(key, 3)
    x = jax.random.normal(kx, (B, IN_DIM), jnp.float32)
    t = jax.random.uniform(kt, (B, 1), jnp.float32, 0.0, 2.0)

    params = build_params(kp)
    consts_raw = build_constants()
    packed = pack_inputs(params, consts_raw)

    out = attention_intensity_forward(x, t, packed)
    out = jax.block_until_ready(out)

    ref = reference_forward(x, t, params, consts_raw)
    assert out.shape == (B, NUM_STATES, NUM_STATES)
    assert jnp.allclose(out, ref, atol=2e-4, rtol=2e-4), (
        f"max abs diff {jnp.max(jnp.abs(out - ref))}"
    )
    print("KERNEL_OK")
</pallas_src>

<mosaic_0001>
module attributes {stable_mosaic.version = 11 : i64} {
  func.func @attention_intensity_kernel(%arg0: i32, %arg1: memref<16x19xf32, #tpu.memory_space<vmem>>, %arg2: memref<2x32x256xf32, #tpu.memory_space<vmem>>, %arg3: memref<2x160x32xf32, #tpu.memory_space<vmem>>, %arg4: memref<248x128xf32, #tpu.memory_space<vmem>>, %arg5: memref<8x128xf32, #tpu.memory_space<vmem>>) attributes {dimension_semantics = [#tpu.dimension_semantics<parallel>], iteration_bounds = array<i64: 1>, scalar_prefetch = 0 : i64, scratch_operands = 0 : i64, tpu.core_type = #tpu.core_type<tc>, window_params = [{transform_indices = @transform_0, window_bounds = array<i64: 16, 19>}, {pipeline_mode = #tpu.pipeline_mode<synchronous>, transform_indices = @transform_1, window_bounds = array<i64: 2, 32, 256>}, {pipeline_mode = #tpu.pipeline_mode<synchronous>, transform_indices = @transform_2, window_bounds = array<i64: 2, 160, 32>}, {pipeline_mode = #tpu.pipeline_mode<synchronous>, transform_indices = @transform_3, window_bounds = array<i64: 248, 128>}, {transform_indices = @transform_4, window_bounds = array<i64: 8, 128>}]} {
    %c0 = arith.constant 0 : index
    %c0_0 = arith.constant 0 : index
    %0 = vector.load %arg4[%c0, %c0_0] : memref<248x128xf32, #tpu.memory_space<vmem>>, vector<19x32xf32>
    %c24 = arith.constant 24 : index
    %c0_1 = arith.constant 0 : index
    %1 = vector.load %arg4[%c24, %c0_1] : memref<248x128xf32, #tpu.memory_space<vmem>>, vector<32x4xf32>
    %c56 = arith.constant 56 : index
    %c0_2 = arith.constant 0 : index
    %2 = vector.load %arg4[%c56, %c0_2] : memref<248x128xf32, #tpu.memory_space<vmem>>, vector<4x32xf32>
    %c64 = arith.constant 64 : index
    %c0_3 = arith.constant 0 : index
    %3 = vector.load %arg4[%c64, %c0_3] : memref<248x128xf32, #tpu.memory_space<vmem>>, vector<32x128xf32>
    %c96 = arith.constant 96 : index
    %c0_4 = arith.constant 0 : index
    %4 = vector.load %arg4[%c96, %c0_4] : memref<248x128xf32, #tpu.memory_space<vmem>>, vector<1x128xf32>
    %c97 = arith.constant 97 : index
    %c0_5 = arith.constant 0 : index
    %5 = vector.load %arg4[%c97, %c0_5] : memref<248x128xf32, #tpu.memory_space<vmem>>, vector<1x128xf32>
    %c104 = arith.constant 104 : index
    %c0_6 = arith.constant 0 : index
    %6 = vector.load %arg4[%c104, %c0_6] : memref<248x128xf32, #tpu.memory_space<vmem>>, vector<128x128xf32>
    %c0_7 = arith.constant 0 : index
    %c0_8 = arith.constant 0 : index
    %7 = vector.load %arg1[%c0_7, %c0_8] : memref<16x19xf32, #tpu.memory_space<vmem>>, vector<16x19xf32>
    %cst = arith.constant dense<0.000000e+00> : vector<16x32xf32>
    %8 = tpu.matmul %7, %0, %cst {dimension_numbers = #tpu.dot_dimension_numbers<[1], [0], [0], [1], [0, 0, 1, 1], [], []>} : vector<16x19xf32>, vector<19x32xf32>, vector<16x32xf32> -> vector<16x32xf32>
    %c0_9 = arith.constant 0 : index
    %c0_10 = arith.constant 0 : index
    %c0_11 = arith.constant 0 : index
    %9 = vector.load %arg2[%c0_9, %c0_10, %c0_11] : memref<2x32x256xf32, #tpu.memory_space<vmem>>, vector<1x32x96xf32>
    %10 = vector.shape_cast %9 : vector<1x32x96xf32> to vector<32x96xf32>
    %c0_12 = arith.constant 0 : index
    %c0_13 = arith.constant 0 : index
    %c128 = arith.constant 128 : index
    %11 = vector.load %arg2[%c0_12, %c0_13, %c128] : memref<2x32x256xf32, #tpu.memory_space<vmem>>, vector<1x32x128xf32>
    %12 = vector.shape_cast %11 : vector<1x32x128xf32> to vector<32x128xf32>
    %c0_14 = arith.constant 0 : index
    %c0_15 = arith.constant 0 : index
    %c0_16 = arith.constant 0 : index
    %13 = vector.load %arg3[%c0_14, %c0_15, %c0_16] : memref<2x160x32xf32, #tpu.memory_space<vmem>>, vector<1x32x32xf32>
    %14 = vector.shape_cast %13 : vector<1x32x32xf32> to vector<32x32xf32>
    %c0_17 = arith.constant 0 : index
    %c32 = arith.constant 32 : index
    %c0_18 = arith.constant 0 : index
    %15 = vector.load %arg3[%c0_17, %c32, %c0_18] : memref<2x160x32xf32, #tpu.memory_space<vmem>>, vector<1x128x32xf32>
    %16 = vector.shape_cast %15 : vector<1x128x32xf32> to vector<128x32xf32>
    %c232 = arith.constant 232 : index
    %c0_19 = arith.constant 0 : index
    %17 = vector.load %arg4[%c232, %c0_19] : memref<248x128xf32, #tpu.memory_space<vmem>>, vector<1x128xf32>
    %18 = vector.extract_strided_slice %17 {offsets = [0, 0], sizes = [1, 96], strides = [1, 1]} : vector<1x128xf32> to vector<1x96xf32>
    %c233 = arith.constant 233 : index
    %c0_20 = arith.constant 0 : index
    %19 = vector.load %arg4[%c233, %c0_20] : memref<248x128xf32, #tpu.memory_space<vmem>>, vector<1x128xf32>
    %20 = vector.extract_strided_slice %19 {offsets = [0, 0], sizes = [1, 32], strides = [1, 1]} : vector<1x128xf32> to vector<1x32xf32>
    %c234 = arith.constant 234 : index
    %c0_21 = arith.constant 0 : index
    %21 = vector.load %arg4[%c234, %c0_21] : memref<248x128xf32, #tpu.memory_space<vmem>>, vector<1x128xf32>
    %c235 = arith.constant 235 : index
    %c0_22 = arith.constant 0 : index
    %22 = vector.load %arg4[%c235, %c0_22] : memref<248x128xf32, #tpu.memory_space<vmem>>, vector<1x128xf32>
    %23 = vector.extract_strided_slice %22 {offsets = [0, 0], sizes = [1, 32], strides = [1, 1]} : vector<1x128xf32> to vector<1x32xf32>
    %c236 = arith.constant 236 : index
    %c0_23 = arith.constant 0 : index
    %24 = vector.load %arg4[%c236, %c0_23] : memref<248x128xf32, #tpu.memory_space<vmem>>, vector<1x128xf32>
    %25 = vector.extract_strided_slice %24 {offsets = [0, 0], sizes = [1, 32], strides = [1, 1]} : vector<1x128xf32> to vector<1x32xf32>
    %c237 = arith.constant 237 : index
    %c0_24 = arith.constant 0 : index
    %26 = vector.load %arg4[%c237, %c0_24] : memref<248x128xf32, #tpu.memory_space<vmem>>, vector<1x128xf32>
    %27 = vector.extract_strided_slice %26 {offsets = [0, 0], sizes = [1, 32], strides = [1, 1]} : vector<1x128xf32> to vector<1x32xf32>
    %c238 = arith.constant 238 : index
    %c0_25 = arith.constant 0 : index
    %28 = vector.load %arg4[%c238, %c0_25] : memref<248x128xf32, #tpu.memory_space<vmem>>, vector<1x128xf32>
    %29 = vector.extract_strided_slice %28 {offsets = [0, 0], sizes = [1, 32], strides = [1, 1]} : vector<1x128xf32> to vector<1x32xf32>
    %c239 = arith.constant 239 : index
    %c0_26 = arith.constant 0 : index
    %30 = vector.load %arg4[%c239, %c0_26] : memref<248x128xf32, #tpu.memory_space<vmem>>, vector<1x128xf32>
    %31 = vector.extract_strided_slice %30 {offsets = [0, 0], sizes = [1, 32], strides = [1, 1]} : vector<1x128xf32> to vector<1x32xf32>
    %cst_27 = arith.constant dense<0.000000e+00> : vector<16x96xf32>
    %32 = tpu.matmul %8, %10, %cst_27 {dimension_numbers = #tpu.dot_dimension_numbers<[1], [0], [0], [1], [0, 0, 1, 1], [], []>} : vector<16x32xf32>, vector<32x96xf32>, vector<16x96xf32> -> vector<16x96xf32>
    %33 = vector.broadcast %18 : vector<1x96xf32> to vector<16x96xf32>
    %34 = arith.addf %32, %33 : vector<16x96xf32>
    %35 = vector.extract_strided_slice %34 {offsets = [0, 0], sizes = [16, 32], strides = [1, 1]} : vector<16x96xf32> to vector<16x32xf32>
    %36 = vector.extract_strided_slice %34 {offsets = [0, 32], sizes = [16, 32], strides = [1, 1]} : vector<16x96xf32> to vector<16x32xf32>
    %37 = vector.extract_strided_slice %34 {offsets = [0, 64], sizes = [16, 32], strides = [1, 1]} : vector<16x96xf32> to vector<16x32xf32>
    %38 = vector.extract_strided_slice %36 {offsets = [0, 0], sizes = [8, 32], strides = [1, 1]} : vector<16x32xf32> to vector<8x32xf32>
    %39 = vector.extract_strided_slice %36 {offsets = [8, 0], sizes = [8, 32], strides = [1, 1]} : vector<16x32xf32> to vector<8x32xf32>
    %40 = arith.subf %38, %39 : vector<8x32xf32>
    %41 = vector.extract_strided_slice %37 {offsets = [0, 0], sizes = [8, 32], strides = [1, 1]} : vector<16x32xf32> to vector<8x32xf32>
    %42 = vector.extract_strided_slice %37 {offsets = [8, 0], sizes = [8, 32], strides = [1, 1]} : vector<16x32xf32> to vector<8x32xf32>
    %43 = arith.subf %41, %42 : vector<8x32xf32>
    %44 = vector.extract_strided_slice %37 {offsets = [8, 0], sizes = [8, 32], strides = [1, 1]} : vector<16x32xf32> to vector<8x32xf32>
    %45 = tpu.concatenate %40, %40 in 0 : vector<8x32xf32>, vector<8x32xf32> -> vector<16x32xf32>
    %46 = tpu.concatenate %43, %43 in 0 : vector<8x32xf32>, vector<8x32xf32> -> vector<16x32xf32>
    %47 = tpu.concatenate %44, %44 in 0 : vector<8x32xf32>, vector<8x32xf32> -> vector<16x32xf32>
    %48 = arith.mulf %35, %45 : vector<16x32xf32>
    %cst_28 = arith.constant dense<0.000000e+00> : vector<16x4xf32>
    %49 = tpu.matmul %48, %1, %cst_28 {dimension_numbers = #tpu.dot_dimension_numbers<[1], [0], [0], [1], [0, 0, 1, 1], [], []>} : vector<16x32xf32>, vector<32x4xf32>, vector<16x4xf32> -> vector<16x4xf32>
    %cst_29 = arith.constant 5.000000e-01 : f32
    %50 = vector.broadcast %cst_29 : f32 to vector<16x4xf32>
    %51 = arith.mulf %50, %49 : vector<16x4xf32>
    %52 = math.tanh %51 : vector<16x4xf32>
    %cst_30 = arith.constant 1.000000e+00 : f32
    %53 = vector.broadcast %cst_30 : f32 to vector<16x4xf32>
    %54 = arith.addf %52, %53 : vector<16x4xf32>
    %cst_31 = arith.constant 5.000000e-01 : f32
    %55 = vector.broadcast %cst_31 : f32 to vector<16x4xf32>
    %56 = arith.mulf %55, %54 : vector<16x4xf32>
    %cst_32 = arith.constant dense<0.000000e+00> : vector<16x32xf32>
    %57 = tpu.matmul %56, %2, %cst_32 {dimension_numbers = #tpu.dot_dimension_numbers<[1], [0], [0], [1], [0, 0, 1, 1], [], []>} : vector<16x4xf32>, vector<4x32xf32>, vector<16x32xf32> -> vector<16x32xf32>
    %58 = arith.mulf %57, %46 : vector<16x32xf32>
    %59 = arith.addf %47, %58 : vector<16x32xf32>
    %cst_33 = arith.constant dense<0.000000e+00> : vector<16x32xf32>
    %60 = tpu.matmul %59, %14, %cst_33 {dimension_numbers = #tpu.dot_dimension_numbers<[1], [0], [0], [1], [0, 0, 1, 1], [], []>} : vector<16x32xf32>, vector<32x32xf32>, vector<16x32xf32> -> vector<16x32xf32>
    %61 = vector.broadcast %20 : vector<1x32xf32> to vector<16x32xf32>
    %62 = arith.addf %60, %61 : vector<16x32xf32>
    %63 = arith.addf %8, %62 : vector<16x32xf32>
    %cst_34 = arith.constant dense<0.000000e+00> : vector<16xf32>
    %64 = vector.multi_reduction <add>, %63, %cst_34 [1] : vector<16x32xf32> to vector<16xf32>
    %65 = vector.shape_cast %64 : vector<16xf32> to vector<16x1xf32>
    %cst_35 = arith.constant 3.200000e+01 : f32
    %66 = vector.broadcast %cst_35 : f32 to vector<16x1xf32>
    %67 = arith.divf %65, %66 : vector<16x1xf32>
    %68 = vector.broadcast %67 : vector<16x1xf32> to vector<16x32xf32>
    %69 = arith.subf %63, %68 : vector<16x32xf32>
    %70 = arith.mulf %69, %69 : vector<16x32xf32>
    %cst_36 = arith.constant dense<0.000000e+00> : vector<16xf32>
    %71 = vector.multi_reduction <add>, %70, %cst_36 [1] : vector<16x32xf32> to vector<16xf32>
    %72 = vector.shape_cast %71 : vector<16xf32> to vector<16x1xf32>
    %cst_37 = arith.constant 3.200000e+01 : f32
    %73 = vector.broadcast %cst_37 : f32 to vector<16x1xf32>
    %74 = arith.divf %72, %73 : vector<16x1xf32>
    %75 = vector.broadcast %67 : vector<16x1xf32> to vector<16x32xf32>
    %76 = arith.subf %63, %75 : vector<16x32xf32>
    %cst_38 = arith.constant 9.99999974E-6 : f32
    %77 = vector.broadcast %cst_38 : f32 to vector<16x1xf32>
    %78 = arith.addf %74, %77 : vector<16x1xf32>
    %79 = math.rsqrt %78 : vector<16x1xf32>
    %80 = vector.broadcast %79 : vector<16x1xf32> to vector<16x32xf32>
    %81 = arith.mulf %76, %80 : vector<16x32xf32>
    %82 = vector.broadcast %25 : vector<1x32xf32> to vector<16x32xf32>
    %83 = arith.mulf %81, %82 : vector<16x32xf32>
    %84 = vector.broadcast %27 : vector<1x32xf32> to vector<16x32xf32>
    %85 = arith.addf %83, %84 : vector<16x32xf32>
    %cst_39 = arith.constant dense<0.000000e+00> : vector<16x128xf32>
    %86 = tpu.matmul %85, %12, %cst_39 {dimension_numbers = #tpu.dot_dimension_numbers<[1], [0], [0], [1], [0, 0, 1, 1], [], []>} : vector<16x32xf32>, vector<32x128xf32>, vector<16x128xf32> -> vector<16x128xf32>
    %87 = vector.broadcast %21 : vector<1x128xf32> to vector<16x128xf32>
    %88 = arith.addf %86, %87 : vector<16x128xf32>
    %cst_40 = arith.constant 0.000000e+00 : f32
    %89 = vector.broadcast %cst_40 : f32 to vector<16x128xf32>
    %90 = arith.maximumf %88, %89 : vector<16x128xf32>
    %cst_41 = arith.constant dense<0.000000e+00> : vector<16x32xf32>
    %91 = tpu.matmul %90, %16, %cst_41 {dimension_numbers = #tpu.dot_dimension_numbers<[1], [0], [0], [1], [0, 0, 1, 1], [], []>} : vector<16x128xf32>, vector<128x32xf32>, vector<16x32xf32> -> vector<16x32xf32>
    %92 = vector.broadcast %23 : vector<1x32xf32> to vector<16x32xf32>
    %93 = arith.addf %91, %92 : vector<16x32xf32>
    %94 = arith.addf %85, %93 : vector<16x32xf32>
    %cst_42 = arith.constant dense<0.000000e+00> : vector<16xf32>
    %95 = vector.multi_reduction <add>, %94, %cst_42 [1] : vector<16x32xf32> to vector<16xf32>
    %96 = vector.shape_cast %95 : vector<16xf32> to vector<16x1xf32>
    %cst_43 = arith.constant 3.200000e+01 : f32
    %97 = vector.broadcast %cst_43 : f32 to vector<16x1xf32>
    %98 = arith.divf %96, %97 : vector<16x1xf32>
    %99 = vector.broadcast %98 : vector<16x1xf32> to vector<16x32xf32>
    %100 = arith.subf %94, %99 : vector<16x32xf32>
    %101 = arith.mulf %100, %100 : vector<16x32xf32>
    %cst_44 = arith.constant dense<0.000000e+00> : vector<16xf32>
    %102 = vector.multi_reduction <add>, %101, %cst_44 [1] : vector<16x32xf32> to vector<16xf32>
    %103 = vector.shape_cast %102 : vector<16xf32> to vector<16x1xf32>
    %cst_45 = arith.constant 3.200000e+01 : f32
    %104 = vector.broadcast %cst_45 : f32 to vector<16x1xf32>
    %105 = arith.divf %103, %104 : vector<16x1xf32>
    %106 = vector.broadcast %98 : vector<16x1xf32> to vector<16x32xf32>
    %107 = arith.subf %94, %106 : vector<16x32xf32>
    %cst_46 = arith.constant 9.99999974E-6 : f32
    %108 = vector.broadcast %cst_46 : f32 to vector<16x1xf32>
    %109 = arith.addf %105, %108 : vector<16x1xf32>
    %110 = math.rsqrt %109 : vector<16x1xf32>
    %111 = vector.broadcast %110 : vector<16x1xf32> to vector<16x32xf32>
    %112 = arith.mulf %107, %111 : vector<16x32xf32>
    %113 = vector.broadcast %29 : vector<1x32xf32> to vector<16x32xf32>
    %114 = arith.mulf %112, %113 : vector<16x32xf32>
    %115 = vector.broadcast %31 : vector<1x32xf32> to vector<16x32xf32>
    %116 = arith.addf %114, %115 : vector<16x32xf32>
    %c1 = arith.constant 1 : index
    %c0_47 = arith.constant 0 : index
    %c0_48 = arith.constant 0 : index
    %117 = vector.load %arg2[%c1, %c0_47, %c0_48] : memref<2x32x256xf32, #tpu.memory_space<vmem>>, vector<1x32x96xf32>
    %118 = vector.shape_cast %117 : vector<1x32x96xf32> to vector<32x96xf32>
    %c1_49 = arith.constant 1 : index
    %c0_50 = arith.constant 0 : index
    %c128_51 = arith.constant 128 : index
    %119 = vector.load %arg2[%c1_49, %c0_50, %c128_51] : memref<2x32x256xf32, #tpu.memory_space<vmem>>, vector<1x32x128xf32>
    %120 = vector.shape_cast %119 : vector<1x32x128xf32> to vector<32x128xf32>
    %c1_52 = arith.constant 1 : index
    %c0_53 = arith.constant 0 : index
    %c0_54 = arith.constant 0 : index
    %121 = vector.load %arg3[%c1_52, %c0_53, %c0_54] : memref<2x160x32xf32, #tpu.memory_space<vmem>>, vector<1x32x32xf32>
    %122 = vector.shape_cast %121 : vector<1x32x32xf32> to vector<32x32xf32>
    %c1_55 = arith.constant 1 : index
    %c32_56 = arith.constant 32 : index
    %c0_57 = arith.constant 0 : index
    %123 = vector.load %arg3[%c1_55, %c32_56, %c0_57] : memref<2x160x32xf32, #tpu.memory_space<vmem>>, vector<1x128x32xf32>
    %124 = vector.shape_cast %123 : vector<1x128x32xf32> to vector<128x32xf32>
    %c240 = arith.constant 240 : index
    %c0_58 = arith.constant 0 : index
    %125 = vector.load %arg4[%c240, %c0_58] : memref<248x128xf32, #tpu.memory_space<vmem>>, vector<1x128xf32>
    %126 = vector.extract_strided_slice %125 {offsets = [0, 0], sizes = [1, 96], strides = [1, 1]} : vector<1x128xf32> to vector<1x96xf32>
    %c241 = arith.constant 241 : index
    %c0_59 = arith.constant 0 : index
    %127 = vector.load %arg4[%c241, %c0_59] : memref<248x128xf32, #tpu.memory_space<vmem>>, vector<1x128xf32>
    %128 = vector.extract_strided_slice %127 {offsets = [0, 0], sizes = [1, 32], strides = [1, 1]} : vector<1x128xf32> to vector<1x32xf32>
    %c242 = arith.constant 242 : index
    %c0_60 = arith.constant 0 : index
    %129 = vector.load %arg4[%c242, %c0_60] : memref<248x128xf32, #tpu.memory_space<vmem>>, vector<1x128xf32>
    %c243 = arith.constant 243 : index
    %c0_61 = arith.constant 0 : index
    %130 = vector.load %arg4[%c243, %c0_61] : memref<248x128xf32, #tpu.memory_space<vmem>>, vector<1x128xf32>
    %131 = vector.extract_strided_slice %130 {offsets = [0, 0], sizes = [1, 32], strides = [1, 1]} : vector<1x128xf32> to vector<1x32xf32>
    %c244 = arith.constant 244 : index
    %c0_62 = arith.constant 0 : index
    %132 = vector.load %arg4[%c244, %c0_62] : memref<248x128xf32, #tpu.memory_space<vmem>>, vector<1x128xf32>
    %133 = vector.extract_strided_slice %132 {offsets = [0, 0], sizes = [1, 32], strides = [1, 1]} : vector<1x128xf32> to vector<1x32xf32>
    %c245 = arith.constant 245 : index
    %c0_63 = arith.constant 0 : index
    %134 = vector.load %arg4[%c245, %c0_63] : memref<248x128xf32, #tpu.memory_space<vmem>>, vector<1x128xf32>
    %135 = vector.extract_strided_slice %134 {offsets = [0, 0], sizes = [1, 32], strides = [1, 1]} : vector<1x128xf32> to vector<1x32xf32>
    %c246 = arith.constant 246 : index
    %c0_64 = arith.constant 0 : index
    %136 = vector.load %arg4[%c246, %c0_64] : memref<248x128xf32, #tpu.memory_space<vmem>>, vector<1x128xf32>
    %137 = vector.extract_strided_slice %136 {offsets = [0, 0], sizes = [1, 32], strides = [1, 1]} : vector<1x128xf32> to vector<1x32xf32>
    %c247 = arith.constant 247 : index
    %c0_65 = arith.constant 0 : index
    %138 = vector.load %arg4[%c247, %c0_65] : memref<248x128xf32, #tpu.memory_space<vmem>>, vector<1x128xf32>
    %139 = vector.extract_strided_slice %138 {offsets = [0, 0], sizes = [1, 32], strides = [1, 1]} : vector<1x128xf32> to vector<1x32xf32>
    %cst_66 = arith.constant dense<0.000000e+00> : vector<16x96xf32>
    %140 = tpu.matmul %116, %118, %cst_66 {dimension_numbers = #tpu.dot_dimension_numbers<[1], [0], [0], [1], [0, 0, 1, 1], [], []>} : vector<16x32xf32>, vector<32x96xf32>, vector<16x96xf32> -> vector<16x96xf32>
    %141 = vector.broadcast %126 : vector<1x96xf32> to vector<16x96xf32>
    %142 = arith.addf %140, %141 : vector<16x96xf32>
    %143 = vector.extract_strided_slice %142 {offsets = [0, 0], sizes = [16, 32], strides = [1, 1]} : vector<16x96xf32> to vector<16x32xf32>
    %144 = vector.extract_strided_slice %142 {offsets = [0, 32], sizes = [16, 32], strides = [1, 1]} : vector<16x96xf32> to vector<16x32xf32>
    %145 = vector.extract_strided_slice %142 {offsets = [0, 64], sizes = [16, 32], strides = [1, 1]} : vector<16x96xf32> to vector<16x32xf32>
    %146 = vector.extract_strided_slice %144 {offsets = [0, 0], sizes = [8, 32], strides = [1, 1]} : vector<16x32xf32> to vector<8x32xf32>
    %147 = vector.extract_strided_slice %144 {offsets = [8, 0], sizes = [8, 32], strides = [1, 1]} : vector<16x32xf32> to vector<8x32xf32>
    %148 = arith.subf %146, %147 : vector<8x32xf32>
    %149 = vector.extract_strided_slice %145 {offsets = [0, 0], sizes = [8, 32], strides = [1, 1]} : vector<16x32xf32> to vector<8x32xf32>
    %150 = vector.extract_strided_slice %145 {offsets = [8, 0], sizes = [8, 32], strides = [1, 1]} : vector<16x32xf32> to vector<8x32xf32>
    %151 = arith.subf %149, %150 : vector<8x32xf32>
    %152 = vector.extract_strided_slice %145 {offsets = [8, 0], sizes = [8, 32], strides = [1, 1]} : vector<16x32xf32> to vector<8x32xf32>
    %153 = tpu.concatenate %148, %148 in 0 : vector<8x32xf32>, vector<8x32xf32> -> vector<16x32xf32>
    %154 = tpu.concatenate %151, %151 in 0 : vector<8x32xf32>, vector<8x32xf32> -> vector<16x32xf32>
    %155 = tpu.concatenate %152, %152 in 0 : vector<8x32xf32>, vector<8x32xf32> -> vector<16x32xf32>
    %156 = arith.mulf %143, %153 : vector<16x32xf32>
    %cst_67 = arith.constant dense<0.000000e+00> : vector<16x4xf32>
    %157 = tpu.matmul %156, %1, %cst_67 {dimension_numbers = #tpu.dot_dimension_numbers<[1], [0], [0], [1], [0, 0, 1, 1], [], []>} : vector<16x32xf32>, vector<32x4xf32>, vector<16x4xf32> -> vector<16x4xf32>
    %cst_68 = arith.constant 5.000000e-01 : f32
    %158 = vector.broadcast %cst_68 : f32 to vector<16x4xf32>
    %159 = arith.mulf %158, %157 : vector<16x4xf32>
    %160 = math.tanh %159 : vector<16x4xf32>
    %cst_69 = arith.constant 1.000000e+00 : f32
    %161 = vector.broadcast %cst_69 : f32 to vector<16x4xf32>
    %162 = arith.addf %160, %161 : vector<16x4xf32>
    %cst_70 = arith.constant 5.000000e-01 : f32
    %163 = vector.broadcast %cst_70 : f32 to vector<16x4xf32>
    %164 = arith.mulf %163, %162 : vector<16x4xf32>
    %cst_71 = arith.constant dense<0.000000e+00> : vector<16x32xf32>
    %165 = tpu.matmul %164, %2, %cst_71 {dimension_numbers = #tpu.dot_dimension_numbers<[1], [0], [0], [1], [0, 0, 1, 1], [], []>} : vector<16x4xf32>, vector<4x32xf32>, vector<16x32xf32> -> vector<16x32xf32>
    %166 = arith.mulf %165, %154 : vector<16x32xf32>
    %167 = arith.addf %155, %166 : vector<16x32xf32>
    %cst_72 = arith.constant dense<0.000000e+00> : vector<16x32xf32>
    %168 = tpu.matmul %167, %122, %cst_72 {dimension_numbers = #tpu.dot_dimension_numbers<[1], [0], [0], [1], [0, 0, 1, 1], [], []>} : vector<16x32xf32>, vector<32x32xf32>, vector<16x32xf32> -> vector<16x32xf32>
    %169 = vector.broadcast %128 : vector<1x32xf32> to vector<16x32xf32>
    %170 = arith.addf %168, %169 : vector<16x32xf32>
    %171 = arith.addf %116, %170 : vector<16x32xf32>
    %cst_73 = arith.constant dense<0.000000e+00> : vector<16xf32>
    %172 = vector.multi_reduction <add>, %171, %cst_73 [1] : vector<16x32xf32> to vector<16xf32>
    %173 = vector.shape_cast %172 : vector<16xf32> to vector<16x1xf32>
    %cst_74 = arith.constant 3.200000e+01 : f32
    %174 = vector.broadcast %cst_74 : f32 to vector<16x1xf32>
    %175 = arith.divf %173, %174 : vector<16x1xf32>
    %176 = vector.broadcast %175 : vector<16x1xf32> to vector<16x32xf32>
    %177 = arith.subf %171, %176 : vector<16x32xf32>
    %178 = arith.mulf %177, %177 : vector<16x32xf32>
    %cst_75 = arith.constant dense<0.000000e+00> : vector<16xf32>
    %179 = vector.multi_reduction <add>, %178, %cst_75 [1] : vector<16x32xf32> to vector<16xf32>
    %180 = vector.shape_cast %179 : vector<16xf32> to vector<16x1xf32>
    %cst_76 = arith.constant 3.200000e+01 : f32
    %181 = vector.broadcast %cst_76 : f32 to vector<16x1xf32>
    %182 = arith.divf %180, %181 : vector<16x1xf32>
    %183 = vector.broadcast %175 : vector<16x1xf32> to vector<16x32xf32>
    %184 = arith.subf %171, %183 : vector<16x32xf32>
    %cst_77 = arith.constant 9.99999974E-6 : f32
    %185 = vector.broadcast %cst_77 : f32 to vector<16x1xf32>
    %186 = arith.addf %182, %185 : vector<16x1xf32>
    %187 = math.rsqrt %186 : vector<16x1xf32>
    %188 = vector.broadcast %187 : vector<16x1xf32> to vector<16x32xf32>
    %189 = arith.mulf %184, %188 : vector<16x32xf32>
    %190 = vector.broadcast %133 : vector<1x32xf32> to vector<16x32xf32>
    %191 = arith.mulf %189, %190 : vector<16x32xf32>
    %192 = vector.broadcast %135 : vector<1x32xf32> to vector<16x32xf32>
    %193 = arith.addf %191, %192 : vector<16x32xf32>
    %cst_78 = arith.constant dense<0.000000e+00> : vector<16x128xf32>
    %194 = tpu.matmul %193, %120, %cst_78 {dimension_numbers = #tpu.dot_dimension_numbers<[1], [0], [0], [1], [0, 0, 1, 1], [], []>} : vector<16x32xf32>, vector<32x128xf32>, vector<16x128xf32> -> vector<16x128xf32>
    %195 = vector.broadcast %129 : vector<1x128xf32> to vector<16x128xf32>
    %196 = arith.addf %194, %195 : vector<16x128xf32>
    %cst_79 = arith.constant 0.000000e+00 : f32
    %197 = vector.broadcast %cst_79 : f32 to vector<16x128xf32>
    %198 = arith.maximumf %196, %197 : vector<16x128xf32>
    %cst_80 = arith.constant dense<0.000000e+00> : vector<16x32xf32>
    %199 = tpu.matmul %198, %124, %cst_80 {dimension_numbers = #tpu.dot_dimension_numbers<[1], [0], [0], [1], [0, 0, 1, 1], [], []>} : vector<16x128xf32>, vector<128x32xf32>, vector<16x32xf32> -> vector<16x32xf32>
    %200 = vector.broadcast %131 : vector<1x32xf32> to vector<16x32xf32>
    %201 = arith.addf %199, %200 : vector<16x32xf32>
    %202 = arith.addf %193, %201 : vector<16x32xf32>
    %cst_81 = arith.constant dense<0.000000e+00> : vector<16xf32>
    %203 = vector.multi_reduction <add>, %202, %cst_81 [1] : vector<16x32xf32> to vector<16xf32>
    %204 = vector.shape_cast %203 : vector<16xf32> to vector<16x1xf32>
    %cst_82 = arith.constant 3.200000e+01 : f32
    %205 = vector.broadcast %cst_82 : f32 to vector<16x1xf32>
    %206 = arith.divf %204, %205 : vector<16x1xf32>
    %207 = vector.broadcast %206 : vector<16x1xf32> to vector<16x32xf32>
    %208 = arith.subf %202, %207 : vector<16x32xf32>
    %209 = arith.mulf %208, %208 : vector<16x32xf32>
    %cst_83 = arith.constant dense<0.000000e+00> : vector<16xf32>
    %210 = vector.multi_reduction <add>, %209, %cst_83 [1] : vector<16x32xf32> to vector<16xf32>
    %211 = vector.shape_cast %210 : vector<16xf32> to vector<16x1xf32>
    %cst_84 = arith.constant 3.200000e+01 : f32
    %212 = vector.broadcast %cst_84 : f32 to vector<16x1xf32>
    %213 = arith.divf %211, %212 : vector<16x1xf32>
    %214 = vector.broadcast %206 : vector<16x1xf32> to vector<16x32xf32>
    %215 = arith.subf %202, %214 : vector<16x32xf32>
    %cst_85 = arith.constant 9.99999974E-6 : f32
    %216 = vector.broadcast %cst_85 : f32 to vector<16x1xf32>
    %217 = arith.addf %213, %216 : vector<16x1xf32>
    %218 = math.rsqrt %217 : vector<16x1xf32>
    %219 = vector.broadcast %218 : vector<16x1xf32> to vector<16x32xf32>
    %220 = arith.mulf %215, %219 : vector<16x32xf32>
    %221 = vector.broadcast %137 : vector<1x32xf32> to vector<16x32xf32>
    %222 = arith.mulf %220, %221 : vector<16x32xf32>
    %223 = vector.broadcast %139 : vector<1x32xf32> to vector<16x32xf32>
    %224 = arith.addf %222, %223 : vector<16x32xf32>
    %225 = vector.extract_strided_slice %224 {offsets = [0, 0], sizes = [8, 32], strides = [1, 1]} : vector<16x32xf32> to vector<8x32xf32>
    %cst_86 = arith.constant dense<0.000000e+00> : vector<8x128xf32>
    %226 = tpu.matmul %225, %3, %cst_86 {dimension_numbers = #tpu.dot_dimension_numbers<[1], [0], [0], [1], [0, 0, 1, 1], [], []>} : vector<8x32xf32>, vector<32x128xf32>, vector<8x128xf32> -> vector<8x128xf32>
    %227 = vector.broadcast %4 : vector<1x128xf32> to vector<8x128xf32>
    %228 = arith.addf %226, %227 : vector<8x128xf32>
    %cst_87 = arith.constant 0.000000e+00 : f32
    %229 = vector.broadcast %cst_87 : f32 to vector<8x128xf32>
    %230 = arith.maximumf %228, %229 : vector<8x128xf32>
    %231 = math.absf %228 : vector<8x128xf32>
    %cst_88 = arith.constant 0.000000e+00 : f32
    %232 = vector.broadcast %cst_88 : f32 to vector<8x128xf32>
    %233 = arith.subf %232, %231 : vector<8x128xf32>
    %234 = math.exp %233 : vector<8x128xf32>
    %235 = math.log1p %234 : vector<8x128xf32>
    %236 = arith.addf %230, %235 : vector<8x128xf32>
    %237 = vector.broadcast %5 : vector<1x128xf32> to vector<8x128xf32>
    %238 = arith.mulf %236, %237 : vector<8x128xf32>
    %cst_89 = arith.constant dense<0.000000e+00> : vector<8x128xf32>
    %239 = tpu.matmul %238, %6, %cst_89 {dimension_numbers = #tpu.dot_dimension_numbers<[1], [0], [0], [1], [0, 0, 1, 1], [], []>} : vector<8x128xf32>, vector<128x128xf32>, vector<8x128xf32> -> vector<8x128xf32>
    %c0_90 = arith.constant 0 : index
    %c0_91 = arith.constant 0 : index
    %240 = vector.load %arg5[%c0_90, %c0_91] : memref<8x128xf32, #tpu.memory_space<vmem>>, vector<8x128xf32>
    tpu.vector_store %arg5[%c0_90, %c0_91], %239 {strides = array<i32>} : memref<8x128xf32, #tpu.memory_space<vmem>>, vector<8x128xf32>,
    return
  }
  func.func @transform_0(%arg0: i32) -> (i32, i32) {
    %c0_i32 = arith.constant 0 : i32
    %c0_i32_0 = arith.constant 0 : i32
    return %arg0, %c0_i32 : i32, i32
  }
  func.func @transform_1(%arg0: i32) -> (i32, i32, i32) {
    %c0_i32 = arith.constant 0 : i32
    %c0_i32_0 = arith.constant 0 : i32
    %c0_i32_1 = arith.constant 0 : i32
    %c0_i32_2 = arith.constant 0 : i32
    return %c0_i32, %c0_i32_0, %c0_i32_1 : i32, i32, i32
  }
  func.func @transform_2(%arg0: i32) -> (i32, i32, i32) {
    %c0_i32 = arith.constant 0 : i32
    %c0_i32_0 = arith.constant 0 : i32
    %c0_i32_1 = arith.constant 0 : i32
    %c0_i32_2 = arith.constant 0 : i32
    return %c0_i32, %c0_i32_0, %c0_i32_1 : i32, i32, i32
  }
  func.func @transform_3(%arg0: i32) -> (i32, i32) {
    %c0_i32 = arith.constant 0 : i32
    %c0_i32_0 = arith.constant 0 : i32
    %c0_i32_1 = arith.constant 0 : i32
    return %c0_i32, %c0_i32_0 : i32, i32
  }
  func.func @transform_4(%arg0: i32) -> (i32, i32) {
    %c0_i32 = arith.constant 0 : i32
    %c0_i32_0 = arith.constant 0 : i32
    return %arg0, %c0_i32 : i32, i32
  }
}

</mosaic_0001>

<llo_original>
// kernel: tpu_custom_call.1
$region0: #{tpu_custom_call.1}
  #allocation0 [shape = 'u32[]', space=smem, size = 0x4, offset = 0x4, fixed_abs, tag = 'smem constant byte address 0x4 - core index']
  #allocation1 [shape = 'u32[144,128]{1,0:T(1,128)}', space=vmem, size = 0x12000, scoped, tag = 'internal scratch']
  %s0 = inlined_call_operand.vmem [shape: f32[16,19], index: 0, kind: input, shape index: {}]
  %s1 = inlined_call_operand.vmem [shape: f32[2,32,256], index: 1, kind: input, shape index: {}]
  %s2 = inlined_call_operand.vmem [shape: f32[2,160,32], index: 2, kind: input, shape index: {}]
  %s3 = inlined_call_operand.vmem [shape: f32[248,128], index: 3, kind: input, shape index: {}]
  %s4 = inlined_call_operand.hbm [shape: f32[8,128], index: 4, kind: output, shape index: {}]
  %s5 = sld [smem:[#allocation0]]
  $region26: #{tpu_custom_call.1} parent=0
    _
  %s7 = ssub.s32 1, %s5
  %s8 = scalar_select 0, %s7, %s5
  $region1: #{tpu_custom_call.1} parent=0
    #allocation2 [shape = 'u8[4096]{0}', space=vmem, size = 0x1000, scoped, tag = 'output window, operand 0, single buffered']
    #allocation3 [shape = 's32[1]{0}', space=sflag, size = 0x4, scoped, tag = 'scoped memory for tpu_custom_call.1']
    %9 = vsyncpa [#allocation3], 0
    // Predicated region
    $region2: #{tpu_custom_call.1} parent=1 // pred_check
      _
    $region3: #{tpu_custom_call.1} parent=1 // pred_check_branch
      %11 = sbr.rel (0) target = $region5
    $region4: #{tpu_custom_call.1} parent=1 // pred_region
      _
    $region5: #{tpu_custom_call.1} parent=1 // pred_fallthru
      _
    // Predicated region
    $region6: #{tpu_custom_call.1} parent=1 // pred_check
      _
    $region7: #{tpu_custom_call.1} parent=1 // pred_check_branch
      %13 = sbr.rel (0) target = $region9
    $region8: #{tpu_custom_call.1} parent=1 // pred_region
      _
    $region9: #{tpu_custom_call.1} parent=1 // pred_fallthru
      _
    // Predicated region
    $region10: #{tpu_custom_call.1} parent=1 // pred_check
      _
    $region11: #{tpu_custom_call.1} parent=1 // pred_check_branch
      %15 = sbr.rel (0) target = $region13
    $region12: #{tpu_custom_call.1} parent=1 // pred_region
      _
    $region13: #{tpu_custom_call.1} parent=1 // pred_fallthru
      _
    // Predicated region
    $region14: #{tpu_custom_call.1} parent=1 // pred_check
      _
    $region15: #{tpu_custom_call.1} parent=1 // pred_check_branch
      %17 = sbr.rel (0) target = $region17
    $region16: #{tpu_custom_call.1} parent=1 // pred_region
      _
    $region17: #{tpu_custom_call.1} parent=1 // pred_fallthru
      _
    %v18 = vld [vmem:[%s3] sm:$0xff]
    %v19 = vld [vmem:[%s3 + $0x8] sm:$0xff]
    %v20 = vld [vmem:[%s3 + $0x10] sm:$0x7]
    %v21 = vld [vmem:[%s3 + $0x18] sm:$0xff]
    %v22 = vld [vmem:[%s3 + $0x20] sm:$0xff]
    %v23 = vld [vmem:[%s3 + $0x28] sm:$0xff]
    %v24 = vld [vmem:[%s3 + $0x30] sm:$0xff]
    %v25 = vld [vmem:[%s3 + $0x38] sm:$0xf]
    %v26 = vld [vmem:[%s3 + $0x40] sm:$0xff]
    %v27 = vld [vmem:[%s3 + $0x48] sm:$0xff]
    %v28 = vld [vmem:[%s3 + $0x50] sm:$0xff]
    %v29 = vld [vmem:[%s3 + $0x58] sm:$0xff]
    %v30 = vld [vmem:[%s3 + $0x60] sm:$0x1]
    %v31 = vld [vmem:[%s3 + $0x61] sm:$0x1]
    %v32 = vld [vmem:[%s3 + $0x68] sm:$0xff]
    %v33 = vld [vmem:[%s3 + $0x70] sm:$0xff]
    %v34 = vld [vmem:[%s3 + $0x78] sm:$0xff]
    %v35 = vld [vmem:[%s3 + $0x80] sm:$0xff]
    %v36 = vld [vmem:[%s3 + $0x88] sm:$0xff]
    %v37 = vld [vmem:[%s3 + $0x90] sm:$0xff]
    %v38 = vld [vmem:[%s3 + $0x98] sm:$0xff]
    %v39 = vld [vmem:[%s3 + $0xa0] sm:$0xff]
    %v40 = vld [vmem:[%s3 + $0xa8] sm:$0xff]
    %v41 = vld [vmem:[%s3 + $0xb0] sm:$0xff]
    %v42 = vld [vmem:[%s3 + $0xb8] sm:$0xff]
    %v43 = vld [vmem:[%s3 + $0xc0] sm:$0xff]
    %v44 = vld [vmem:[%s3 + $0xc8] sm:$0xff]
    %v45 = vld [vmem:[%s3 + $0xd0] sm:$0xff]
    %v46 = vld [vmem:[%s3 + $0xd8] sm:$0xff]
    %v47 = vld [vmem:[%s3 + $0xe0] sm:$0xff]
    %v48 = vld [vmem:[%s0] sm:$0xff]
    %v49 = vld [vmem:[%s0 + $0x8] sm:$0xff]
    %vm50 = vcmask 154624
    %v52 = vsel %vm50, %v48, 0
    %v55 = vsel %vm50, %v49, 0
    %vm57 = vcmask 1042432
    %v59 = vsel %vm57, %v20, 0
    %61 = vmatprep.subr.mxu0 0.0
    %62 = vmatpush1.msra.mxu0 %v18
    %63 = vmatprep.subr.mxu0 0.0
    %64 = vmatpush1.msra.mxu0 %v19
    %65 = vmatprep.subr.mxu0 0.0
    %66 = vmatpush1.msra.mxu0 %v59
    %67 = vmatprep.subr.mxu0 0.0
    %68 = vmatpush1.msra.mxu0 0.0
    %69 = vmatprep.subr.mxu0 0.0
    %70 = vmatpush1.msra.mxu0 0.0
    %71 = vmatprep.subr.mxu0 0.0
    %72 = vmatpush1.msra.mxu0 0.0
    %73 = vmatprep.subr.mxu0 0.0
    %74 = vmatpush1.msra.mxu0 0.0
    %75 = vmatprep.subr.mxu0 0.0
    %76 = vmatpush1.msra.mxu0 0.0
    %77 = vmatprep.subr.mxu0 0.0
    %78 = vmatpush1.msra.mxu0 0.0
    %79 = vmatprep.subr.mxu0 0.0
    %80 = vmatpush1.msra.mxu0 0.0
    %81 = vmatprep.subr.mxu0 0.0
    %82 = vmatpush1.msra.mxu0 0.0
    %83 = vmatprep.subr.mxu0 0.0
    %84 = vmatpush1.msra.mxu0 0.0
    %85 = vmatprep.subr.mxu0 0.0
    %86 = vmatpush1.msra.mxu0 0.0
    %87 = vmatprep.subr.mxu0 0.0
    %88 = vmatpush1.msra.mxu0 0.0
    %89 = vmatprep.subr.mxu0 0.0
    %90 = vmatpush1.msra.mxu0 0.0
    %91 = vmatprep.subr.mxu0 0.0
    %92 = vmatpush1.msra.mxu0 0.0
    %93 = vmatprep.subr.mxu0 0.0
    %94 = vmatpush1.msra.mxu0 0.0
    %95 = vmatprep.subr.mxu0 0.0
    %96 = vmatpush1.msra.mxu0 0.0
    %97 = vmatprep.subr.mxu0 0.0
    %98 = vmatpush1.msra.mxu0 0.0
    %99 = vmatprep.subr.mxu0 0.0
    %100 = vmatpush1.msra.mxu0 0.0
    %101 = vmatprep.subr.mxu0 0.0
    %102 = vmatpush1.msra.mxu0 0.0
    %103 = vmatprep.subr.mxu0 0.0
    %104 = vmatpush1.msra.mxu0 0.0
    %105 = vmatprep.subr.mxu0 0.0
    %106 = vmatpush1.msra.mxu0 0.0
    %107 = vmatprep.subr.mxu0 0.0
    %108 = vmatpush1.msra.mxu0 0.0
    %109 = vmatprep.subr.mxu0 0.0
    %110 = vmatpush1.msra.mxu0 0.0
    %111 = vmatprep.subr.mxu0 0.0
    %112 = vmatpush1.msra.mxu0 0.0
    %113 = vmatprep.subr.mxu0 0.0
    %114 = vmatpush1.msra.mxu0 0.0
    %115 = vmatprep.subr.mxu0 0.0
    %116 = vmatpush1.msra.mxu0 0.0
    %117 = vmatprep.subr.mxu0 0.0
    %118 = vmatpush1.msra.mxu0 0.0
    %119 = vmatprep.subr.mxu0 0.0
    %120 = vmatpush1.msra.mxu0 0.0
    %121 = vmatprep.subr.mxu0 0.0
    %122 = vmatpush1.msra.mxu0 0.0
    %123 = vmatprep.subr.mxu0 0.0
    %124 = vmatpush1.msra.mxu0 0.0
    %125 = vmatprep.mubr.f32.mxu0 0.0
    %126 = vmatmul.mubr.f32.gmra.mrb[0].mxu0 %v52
    %v127 = vpop.f32.mrb[0].mxu0
    %v128 = vadd.f32 0.0, %v127
    %v129 = vpop.f32.mrb[0].mxu0
    %130 = vmatprep.mubr.f32.mxu0 0.0
    %131 = vmatmul.mubr.f32.gmra.mrb[0].mxu0 %v55
    %v132 = vpop.f32.mrb[0].mxu0
    %v133 = vadd.f32 0.0, %v132
    %v134 = vpop.f32.mrb[0].mxu0
    %135 = vdwg.mxu0
    %v136 = vld [vmem:[%s1] sm:$0xff]
    %v137 = vld [vmem:[%s1 + $0x10] sm:$0xff]
    %v138 = vld [vmem:[%s1 + $0x20] sm:$0xff]
    %v139 = vld [vmem:[%s1 + $0x30] sm:$0xff]
    %v140 = vld [vmem:[%s1 + $0x8] sm:$0xff]
    %v141 = vld [vmem:[%s1 + $0x18] sm:$0xff]
    %v142 = vld [vmem:[%s1 + $0x28] sm:$0xff]
    %v143 = vld [vmem:[%s1 + $0x38] sm:$0xff]
    %v144 = vld [vmem:[%s2] sm:$0xff]
    %v145 = vld [vmem:[%s2 + $0x8] sm:$0xff]
    %v146 = vld [vmem:[%s2 + $0x10] sm:$0xff]
    %v147 = vld [vmem:[%s2 + $0x18] sm:$0xff]
    %v148 = vld [vmem:[%s2 + $0x20] sm:$0xff]
    %v149 = vld [vmem:[%s2 + $0x28] sm:$0xff]
    %v150 = vld [vmem:[%s2 + $0x30] sm:$0xff]
    %v151 = vld [vmem:[%s2 + $0x38] sm:$0xff]
    %v152 = vld [vmem:[%s2 + $0x40] sm:$0xff]
    %v153 = vld [vmem:[%s2 + $0x48] sm:$0xff]
    %v154 = vld [vmem:[%s2 + $0x50] sm:$0xff]
    %v155 = vld [vmem:[%s2 + $0x58] sm:$0xff]
    %v156 = vld [vmem:[%s2 + $0x60] sm:$0xff]
    %v157 = vld [vmem:[%s2 + $0x68] sm:$0xff]
    %v158 = vld [vmem:[%s2 + $0x70] sm:$0xff]
    %v159 = vld [vmem:[%s2 + $0x78] sm:$0xff]
    %v160 = vld [vmem:[%s2 + $0x80] sm:$0xff]
    %v161 = vld [vmem:[%s2 + $0x88] sm:$0xff]
    %v162 = vld [vmem:[%s2 + $0x90] sm:$0xff]
    %v163 = vld [vmem:[%s2 + $0x98] sm:$0xff]
    %v164 = vld [vmem:[%s3 + $0xe8] sm:$0x1]
    %v165 = vld [vmem:[%s3 + $0xe9] sm:$0x1]
    %v166 = vld [vmem:[%s3 + $0xea] sm:$0x1]
    %v167 = vld [vmem:[%s3 + $0xeb] sm:$0x1]
    %v168 = vld [vmem:[%s3 + $0xec] sm:$0x1]
    %v169 = vld [vmem:[%s3 + $0xed] sm:$0x1]
    %v170 = vld [vmem:[%s3 + $0xee] sm:$0x1]
    %v171 = vld [vmem:[%s3 + $0xef] sm:$0x1]
    %v172 = vlaneseq
    %v173 = vshrl.u32 %v172, 7
    %v174 = vsub.s32 0, %v173
    %v175 = vrot.slane %v164, %v174
    %vm176 = vcmask 261120
    %v178 = vsel %vm176, %v128, 0
    %v181 = vsel %vm176, %v133, 0
    %183 = vmatprep.subr.mxu0 0.0
    %184 = vmatpush1.msra.mxu0 %v136
    %185 = vmatprep.subr.mxu0 0.0
    %186 = vmatpush1.msra.mxu0 %v137
    %187 = vmatprep.subr.mxu0 0.0
    %188 = vmatpush1.msra.mxu0 %v138
    %189 = vmatprep.subr.mxu0 0.0
    %190 = vmatpush1.msra.mxu0 %v139
    %191 = vmatprep.subr.mxu0 0.0
    %192 = vmatpush1.msra.mxu0 0.0
    %193 = vmatprep.subr.mxu0 0.0
    %194 = vmatpush1.msra.mxu0 0.0
    %195 = vmatprep.subr.mxu0 0.0
    %196 = vmatpush1.msra.mxu0 0.0
    %197 = vmatprep.subr.mxu0 0.0
    %198 = vmatpush1.msra.mxu0 0.0
    %199 = vmatprep.subr.mxu0 0.0
    %200 = vmatpush1.msra.mxu0 0.0
    %201 = vmatprep.subr.mxu0 0.0
    %202 = vmatpush1.msra.mxu0 0.0
    %203 = vmatprep.subr.mxu0 0.0
    %204 = vmatpush1.msra.mxu0 0.0
    %205 = vmatprep.subr.mxu0 0.0
    %206 = vmatpush1.msra.mxu0 0.0
    %207 = vmatprep.subr.mxu0 0.0
    %208 = vmatpush1.msra.mxu0 0.0
    %209 = vmatprep.subr.mxu0 0.0
    %210 = vmatpush1.msra.mxu0 0.0
    %211 = vmatprep.subr.mxu0 0.0
    %212 = vmatpush1.msra.mxu0 0.0
    %213 = vmatprep.subr.mxu0 0.0
    %214 = vmatpush1.msra.mxu0 0.0
    %215 = vmatprep.subr.mxu0 0.0
    %216 = vmatpush1.msra.mxu0 0.0
    %217 = vmatprep.subr.mxu0 0.0
    %218 = vmatpush1.msra.mxu0 0.0
    %219 = vmatprep.subr.mxu0 0.0
    %220 = vmatpush1.msra.mxu0 0.0
    %221 = vmatprep.subr.mxu0 0.0
    %222 = vmatpush1.msra.mxu0 0.0
    %223 = vmatprep.subr.mxu0 0.0
    %224 = vmatpush1.msra.mxu0 0.0
    %225 = vmatprep.subr.mxu0 0.0
    %226 = vmatpush1.msra.mxu0 0.0
    %227 = vmatprep.subr.mxu0 0.0
    %228 = vmatpush1.msra.mxu0 0.0
    %229 = vmatprep.subr.mxu0 0.0
    %230 = vmatpush1.msra.mxu0 0.0
    %231 = vmatprep.subr.mxu0 0.0
    %232 = vmatpush1.msra.mxu0 0.0
    %233 = vmatprep.subr.mxu0 0.0
    %234 = vmatpush1.msra.mxu0 0.0
    %235 = vmatprep.subr.mxu0 0.0
    %236 = vmatpush1.msra.mxu0 0.0
    %237 = vmatprep.subr.mxu0 0.0
    %238 = vmatpush1.msra.mxu0 0.0
    %239 = vmatprep.subr.mxu0 0.0
    %240 = vmatpush1.msra.mxu0 0.0
    %241 = vmatprep.subr.mxu0 0.0
    %242 = vmatpush1.msra.mxu0 0.0
    %243 = vmatprep.subr.mxu0 0.0
    %244 = vmatpush1.msra.mxu0 0.0
    %245 = vmatprep.subr.mxu0 0.0
    %246 = vmatpush1.msra.mxu0 0.0
    %247 = vmatprep.mubr.f32.mxu0 0.0
    %248 = vmatmul.mubr.f32.gmra.mrb[0].mxu0 %v178
    %v249 = vpop.f32.mrb[0].mxu0
    %v250 = vadd.f32 %v175, %v249
    %v251 = vpop.f32.mrb[0].mxu0
    %252 = vmatprep.mubr.f32.mxu0 0.0
    %253 = vmatmul.mubr.f32.gmra.mrb[0].mxu0 %v181
    %v254 = vpop.f32.mrb[0].mxu0
    %v255 = vadd.f32 %v175, %v254
    %v256 = vpop.f32.mrb[0].mxu0
    %257 = vdwg.mxu0
    %v258 = vsub.f32 %v250, %v255
    %260 = vrot.lane.b32.xlu0 %v258, 96
    %v261 = vpop.permute.xlu0 %260
    %v263 = vmul.f32 %v250, %v261
    %v264 = vmul.f32 %v255, %v261
    %v266 = vsel %vm176, %v263, 0
    %v269 = vsel %vm176, %v264, 0
    %271 = vmatprep.subr.mxu0 0.0
    %272 = vmatpush1.msra.mxu0 %v21
    %273 = vmatprep.subr.mxu0 0.0
    %274 = vmatpush1.msra.mxu0 %v22
    %275 = vmatprep.subr.mxu0 0.0
    %276 = vmatpush1.msra.mxu0 %v23
    %277 = vmatprep.subr.mxu0 0.0
    %278 = vmatpush1.msra.mxu0 %v24
    %279 = vmatprep.subr.mxu0 0.0
    %280 = vmatpush1.msra.mxu0 0.0
    %281 = vmatprep.subr.mxu0 0.0
    %282 = vmatpush1.msra.mxu0 0.0
    %283 = vmatprep.subr.mxu0 0.0
    %284 = vmatpush1.msra.mxu0 0.0
    %285 = vmatprep.subr.mxu0 0.0
    %286 = vmatpush1.msra.mxu0 0.0
    %287 = vmatprep.subr.mxu0 0.0
    %288 = vmatpush1.msra.mxu0 0.0
    %289 = vmatprep.subr.mxu0 0.0
    %290 = vmatpush1.msra.mxu0 0.0
    %291 = vmatprep.subr.mxu0 0.0
    %292 = vmatpush1.msra.mxu0 0.0
    %293 = vmatprep.subr.mxu0 0.0
    %294 = vmatpush1.msra.mxu0 0.0
    %295 = vmatprep.subr.mxu0 0.0
    %296 = vmatpush1.msra.mxu0 0.0
    %297 = vmatprep.subr.mxu0 0.0
    %298 = vmatpush1.msra.mxu0 0.0
    %299 = vmatprep.subr.mxu0 0.0
    %300 = vmatpush1.msra.mxu0 0.0
    %301 = vmatprep.subr.mxu0 0.0
    %302 = vmatpush1.msra.mxu0 0.0
    %303 = vmatprep.subr.mxu0 0.0
    %304 = vmatpush1.msra.mxu0 0.0
    %305 = vmatprep.subr.mxu0 0.0
    %306 = vmatpush1.msra.mxu0 0.0
    %307 = vmatprep.subr.mxu0 0.0
    %308 = vmatpush1.msra.mxu0 0.0
    %309 = vmatprep.subr.mxu0 0.0
    %310 = vmatpush1.msra.mxu0 0.0
    %311 = vmatprep.subr.mxu0 0.0
    %312 = vmatpush1.msra.mxu0 0.0
    %313 = vmatprep.subr.mxu0 0.0
    %314 = vmatpush1.msra.mxu0 0.0
    %315 = vmatprep.subr.mxu0 0.0
    %316 = vmatpush1.msra.mxu0 0.0
    %317 = vmatprep.subr.mxu0 0.0
    %318 = vmatpush1.msra.mxu0 0.0
    %319 = vmatprep.subr.mxu0 0.0
    %320 = vmatpush1.msra.mxu0 0.0
    %321 = vmatprep.subr.mxu0 0.0
    %322 = vmatpush1.msra.mxu0 0.0
    %323 = vmatprep.subr.mxu0 0.0
    %324 = vmatpush1.msra.mxu0 0.0
    %325 = vmatprep.subr.mxu0 0.0
    %326 = vmatpush1.msra.mxu0 0.0
    %327 = vmatprep.subr.mxu0 0.0
    %328 = vmatpush1.msra.mxu0 0.0
    %329 = vmatprep.subr.mxu0 0.0
    %330 = vmatpush1.msra.mxu0 0.0
    %331 = vmatprep.subr.mxu0 0.0
    %332 = vmatpush1.msra.mxu0 0.0
    %333 = vmatprep.subr.mxu0 0.0
    %334 = vmatpush1.msra.mxu0 0.0
    %335 = vmatprep.mubr.f32.mxu0 0.0
    %336 = vmatmul.mubr.f32.gmra.mrb[0].mxu0 %v266
    %v337 = vpop.f32.mrb[0].mxu0
    %v338 = vadd.f32 0.0, %v337
    %v339 = vpop.f32.mrb[0].mxu0
    %340 = vmatprep.mubr.f32.mxu0 0.0
    %341 = vmatmul.mubr.f32.gmra.mrb[0].mxu0 %v269
    %v342 = vpop.f32.mrb[0].mxu0
    %v343 = vadd.f32 0.0, %v342
    %v344 = vpop.f32.mrb[0].mxu0
    %345 = vdwg.mxu0
    %v346 = vmul.f32 %v338, 0.5
    %v347 = vmul.f32 %v343, 0.5
    %v348 = vtanh.pop %v346
    %v349 = vtanh.pop %v347
    %v350 = vadd.f32 %v348, 1.0
    %v351 = vadd.f32 %v349, 1.0
    %v352 = vmul.f32 %v350, 0.5
    %v353 = vmul.f32 %v351, 0.5
    %vm354 = vcmask 31744
    %v356 = vsel %vm354, %v352, 0
    %v359 = vsel %vm354, %v353, 0
    %vm361 = vcmask 1043456
    %v363 = vsel %vm361, %v25, 0
    %365 = vmatprep.subr.mxu0 0.0
    %366 = vmatpush1.msra.mxu0 %v363
    %367 = vmatprep.subr.mxu0 0.0
    %368 = vmatpush1.msra.mxu0 0.0
    %369 = vmatprep.subr.mxu0 0.0
    %370 = vmatpush1.msra.mxu0 0.0
    %371 = vmatprep.subr.mxu0 0.0
    %372 = vmatpush1.msra.mxu0 0.0
    %373 = vmatprep.subr.mxu0 0.0
    %374 = vmatpush1.msra.mxu0 0.0
    %375 = vmatprep.subr.mxu0 0.0
    %376 = vmatpush1.msra.mxu0 0.0
    %377 = vmatprep.subr.mxu0 0.0
    %378 = vmatpush1.msra.mxu0 0.0
    %379 = vmatprep.subr.mxu0 0.0
    %380 = vmatpush1.msra.mxu0 0.0
    %381 = vmatprep.subr.mxu0 0.0
    %382 = vmatpush1.msra.mxu0 0.0
    %383 = vmatprep.subr.mxu0 0.0
    %384 = vmatpush1.msra.mxu0 0.0
    %385 = vmatprep.subr.mxu0 0.0
    %386 = vmatpush1.msra.mxu0 0.0
    %387 = vmatprep.subr.mxu0 0.0
    %388 = vmatpush1.msra.mxu0 0.0
    %389 = vmatprep.subr.mxu0 0.0
    %390 = vmatpush1.msra.mxu0 0.0
    %391 = vmatprep.subr.mxu0 0.0
    %392 = vmatpush1.msra.mxu0 0.0
    %393 = vmatprep.subr.mxu0 0.0
    %394 = vmatpush1.msra.mxu0 0.0
    %395 = vmatprep.subr.mxu0 0.0
    %396 = vmatpush1.msra.mxu0 0.0
    %397 = vmatprep.subr.mxu0 0.0
    %398 = vmatpush1.msra.mxu0 0.0
    %399 = vmatprep.subr.mxu0 0.0
    %400 = vmatpush1.msra.mxu0 0.0
    %401 = vmatprep.subr.mxu0 0.0
    %402 = vmatpush1.msra.mxu0 0.0
    %403 = vmatprep.subr.mxu0 0.0
    %404 = vmatpush1.msra.mxu0 0.0
    %405 = vmatprep.subr.mxu0 0.0
    %406 = vmatpush1.msra.mxu0 0.0
    %407 = vmatprep.subr.mxu0 0.0
    %408 = vmatpush1.msra.mxu0 0.0
    %409 = vmatprep.subr.mxu0 0.0
    %410 = vmatpush1.msra.mxu0 0.0
    %411 = vmatprep.subr.mxu0 0.0
    %412 = vmatpush1.msra.mxu0 0.0
    %413 = vmatprep.subr.mxu0 0.0
    %414 = vmatpush1.msra.mxu0 0.0
    %415 = vmatprep.subr.mxu0 0.0
    %416 = vmatpush1.msra.mxu0 0.0
    %417 = vmatprep.subr.mxu0 0.0
    %418 = vmatpush1.msra.mxu0 0.0
    %419 = vmatprep.subr.mxu0 0.0
    %420 = vmatpush1.msra.mxu0 0.0
    %421 = vmatprep.subr.mxu0 0.0
    %422 = vmatpush1.msra.mxu0 0.0
    %423 = vmatprep.subr.mxu0 0.0
    %424 = vmatpush1.msra.mxu0 0.0
    %425 = vmatprep.subr.mxu0 0.0
    %426 = vmatpush1.msra.mxu0 0.0
    %427 = vmatprep.subr.mxu0 0.0
    %428 = vmatpush1.msra.mxu0 0.0
    %429 = vmatprep.mubr.f32.mxu0 0.0
    %430 = vmatmul.mubr.f32.gmra.mrb[0].mxu0 %v356
    %v431 = vpop.f32.mrb[0].mxu0
    %v432 = vadd.f32 0.0, %v431
    %v433 = vpop.f32.mrb[0].mxu0
    %434 = vmatprep.mubr.f32.mxu0 0.0
    %435 = vmatmul.mubr.f32.gmra.mrb[0].mxu0 %v359
    %v436 = vpop.f32.mrb[0].mxu0
    %v437 = vadd.f32 0.0, %v436
    %v438 = vpop.f32.mrb[0].mxu0
    %439 = vdwg.mxu0
    %440 = vrot.lane.b32.xlu0 %v258, 64
    %v441 = vpop.permute.xlu0 %440
    %v443 = vmul.f32 %v432, %v441
    %v444 = vmul.f32 %v437, %v441
    %447 = vrot.lane.b32.xlu0 %v443, 64
    %v448 = vpop.permute.xlu0 %447
    %449 = vrot.lane.b32.xlu0 %v444, 64
    %v450 = vpop.permute.xlu0 %449
    %v453 = vadd.f32 %v255, %v448
    %v454 = vadd.f32 %v255, %v450
    %v455 = vlaneseq
    %v456 = vshrl.u32 %v455, 7
    %v457 = vsub.s32 0, %v456
    %v458 = vrot.slane %v165, %v457
    %461 = vrot.lane.b32.xlu0 %v453, 64
    %v462 = vpop.permute.xlu0 %461
    %463 = vrot.lane.b32.xlu0 %v454, 64
    %v464 = vpop.permute.xlu0 %463
    %v465 = vsel %vm176, %v462, 0
    %v467 = vsel %vm176, %v464, 0
    %469 = vmatprep.subr.mxu0 0.0
    %470 = vmatpush1.msra.mxu0 %v144
    %471 = vmatprep.subr.mxu0 0.0
    %472 = vmatpush1.msra.mxu0 %v145
    %473 = vmatprep.subr.mxu0 0.0
    %474 = vmatpush1.msra.mxu0 %v146
    %475 = vmatprep.subr.mxu0 0.0
    %476 = vmatpush1.msra.mxu0 %v147
    %477 = vmatprep.subr.mxu0 0.0
    %478 = vmatpush1.msra.mxu0 0.0
    %479 = vmatprep.subr.mxu0 0.0
    %480 = vmatpush1.msra.mxu0 0.0
    %481 = vmatprep.subr.mxu0 0.0
    %482 = vmatpush1.msra.mxu0 0.0
    %483 = vmatprep.subr.mxu0 0.0
    %484 = vmatpush1.msra.mxu0 0.0
    %485 = vmatprep.subr.mxu0 0.0
    %486 = vmatpush1.msra.mxu0 0.0
    %487 = vmatprep.subr.mxu0 0.0
    %488 = vmatpush1.msra.mxu0 0.0
    %489 = vmatprep.subr.mxu0 0.0
    %490 = vmatpush1.msra.mxu0 0.0
    %491 = vmatprep.subr.mxu0 0.0
    %492 = vmatpush1.msra.mxu0 0.0
    %493 = vmatprep.subr.mxu0 0.0
    %494 = vmatpush1.msra.mxu0 0.0
    %495 = vmatprep.subr.mxu0 0.0
    %496 = vmatpush1.msra.mxu0 0.0
    %497 = vmatprep.subr.mxu0 0.0
    %498 = vmatpush1.msra.mxu0 0.0
    %499 = vmatprep.subr.mxu0 0.0
    %500 = vmatpush1.msra.mxu0 0.0
    %501 = vmatprep.subr.mxu0 0.0
    %502 = vmatpush1.msra.mxu0 0.0
    %503 = vmatprep.subr.mxu0 0.0
    %504 = vmatpush1.msra.mxu0 0.0
    %505 = vmatprep.subr.mxu0 0.0
    %506 = vmatpush1.msra.mxu0 0.0
    %507 = vmatprep.subr.mxu0 0.0
    %508 = vmatpush1.msra.mxu0 0.0
    %509 = vmatprep.subr.mxu0 0.0
    %510 = vmatpush1.msra.mxu0 0.0
    %511 = vmatprep.subr.mxu0 0.0
    %512 = vmatpush1.msra.mxu0 0.0
    %513 = vmatprep.subr.mxu0 0.0
    %514 = vmatpush1.msra.mxu0 0.0
    %515 = vmatprep.subr.mxu0 0.0
    %516 = vmatpush1.msra.mxu0 0.0
    %517 = vmatprep.subr.mxu0 0.0
    %518 = vmatpush1.msra.mxu0 0.0
    %519 = vmatprep.subr.mxu0 0.0
    %520 = vmatpush1.msra.mxu0 0.0
    %521 = vmatprep.subr.mxu0 0.0
    %522 = vmatpush1.msra.mxu0 0.0
    %523 = vmatprep.subr.mxu0 0.0
    %524 = vmatpush1.msra.mxu0 0.0
    %525 = vmatprep.subr.mxu0 0.0
    %526 = vmatpush1.msra.mxu0 0.0
    %527 = vmatprep.subr.mxu0 0.0
    %528 = vmatpush1.msra.mxu0 0.0
    %529 = vmatprep.subr.mxu0 0.0
    %530 = vmatpush1.msra.mxu0 0.0
    %531 = vmatprep.subr.mxu0 0.0
    %532 = vmatpush1.msra.mxu0 0.0
    %533 = vmatprep.mubr.f32.mxu0 0.0
    %534 = vmatmul.mubr.f32.gmra.mrb[0].mxu0 %v465
    %v535 = vpop.f32.mrb[0].mxu0
    %v536 = vadd.f32 %v458, %v535
    %v537 = vpop.f32.mrb[0].mxu0
    %538 = vmatprep.mubr.f32.mxu0 0.0
    %539 = vmatmul.mubr.f32.gmra.mrb[0].mxu0 %v467
    %v540 = vpop.f32.mrb[0].mxu0
    %v541 = vadd.f32 %v458, %v540
    %v542 = vpop.f32.mrb[0].mxu0
    %543 = vdwg.mxu0
    %v544 = vadd.f32 %v128, %v536
    %v545 = vadd.f32 %v133, %v541
    %v546 = vsel %vm176, %v544, 0.0
    %547 = vadd.xlane.f32.xlu0 %v546
    %v548 = vpop.xlane.xlu0 %547
    %v549 = vsel %vm176, %v545, 0.0
    %550 = vadd.xlane.f32.xlu0 %v549
    %v551 = vpop.xlane.xlu0 %550
    %v552 = vrcp.pop 32.0
    %v553 = vmul.f32 %v548, %v552
    %v554 = vmul.f32 %v551, %v552
    %v555 = vsub.f32 %v544, %v553
    %v556 = vsub.f32 %v545, %v554
    %v557 = vmul.f32 %v555, %v555
    %v558 = vmul.f32 %v556, %v556
    %v559 = vsel %vm176, %v557, 0.0
    %560 = vadd.xlane.f32.xlu0 %v559
    %v561 = vpop.xlane.xlu0 %560
    %v562 = vsel %vm176, %v558, 0.0
    %563 = vadd.xlane.f32.xlu0 %v562
    %v564 = vpop.xlane.xlu0 %563
    %v565 = vmul.f32 %v561, %v552
    %v566 = vmul.f32 %v564, %v552
    %v567 = vadd.f32 %v565, 1e-05
    %v568 = vadd.f32 %v566, 1e-05
    %v569 = vrsqrt.pop %v567
    %v570 = vrsqrt.pop %v568
    %v571 = vmul.f32 %v555, %v569
    %v572 = vmul.f32 %v556, %v570
    %v573 = vlaneseq
    %v574 = vshrl.u32 %v573, 7
    %v575 = vsub.s32 0, %v574
    %v576 = vrot.slane %v168, %v575
    %v577 = vmul.f32 %v571, %v576
    %v578 = vmul.f32 %v572, %v576
    %v579 = vlaneseq
    %v580 = vshrl.u32 %v579, 7
    %v581 = vsub.s32 0, %v580
    %v582 = vrot.slane %v169, %v581
    %v583 = vadd.f32 %v577, %v582
    %v584 = vadd.f32 %v578, %v582
    %v585 = vlaneseq
    %v586 = vshrl.u32 %v585, 7
    %v587 = vsub.s32 0, %v586
    %v588 = vrot.slane %v166, %v587
    %v590 = vsel %vm176, %v583, 0
    %v593 = vsel %vm176, %v584, 0
    %595 = vmatprep.subr.mxu0 0.0
    %596 = vmatpush1.msra.mxu0 %v140
    %597 = vmatprep.subr.mxu0 0.0
    %598 = vmatpush1.msra.mxu0 %v141
    %599 = vmatprep.subr.mxu0 0.0
    %600 = vmatpush1.msra.mxu0 %v142
    %601 = vmatprep.subr.mxu0 0.0
    %602 = vmatpush1.msra.mxu0 %v143
    %603 = vmatprep.subr.mxu0 0.0
    %604 = vmatpush1.msra.mxu0 0.0
    %605 = vmatprep.subr.mxu0 0.0
    %606 = vmatpush1.msra.mxu0 0.0
    %607 = vmatprep.subr.mxu0 0.0
    %608 = vmatpush1.msra.mxu0 0.0
    %609 = vmatprep.subr.mxu0 0.0
    %610 = vmatpush1.msra.mxu0 0.0
    %611 = vmatprep.subr.mxu0 0.0
    %612 = vmatpush1.msra.mxu0 0.0
    %613 = vmatprep.subr.mxu0 0.0
    %614 = vmatpush1.msra.mxu0 0.0
    %615 = vmatprep.subr.mxu0 0.0
    %616 = vmatpush1.msra.mxu0 0.0
    %617 = vmatprep.subr.mxu0 0.0
    %618 = vmatpush1.msra.mxu0 0.0
    %619 = vmatprep.subr.mxu0 0.0
    %620 = vmatpush1.msra.mxu0 0.0
    %621 = vmatprep.subr.mxu0 0.0
    %622 = vmatpush1.msra.mxu0 0.0
    %623 = vmatprep.subr.mxu0 0.0
    %624 = vmatpush1.msra.mxu0 0.0
    %625 = vmatprep.subr.mxu0 0.0
    %626 = vmatpush1.msra.mxu0 0.0
    %627 = vmatprep.subr.mxu0 0.0
    %628 = vmatpush1.msra.mxu0 0.0
    %629 = vmatprep.subr.mxu0 0.0
    %630 = vmatpush1.msra.mxu0 0.0
    %631 = vmatprep.subr.mxu0 0.0
    %632 = vmatpush1.msra.mxu0 0.0
    %633 = vmatprep.subr.mxu0 0.0
    %634 = vmatpush1.msra.mxu0 0.0
    %635 = vmatprep.subr.mxu0 0.0
    %636 = vmatpush1.msra.mxu0 0.0
    %637 = vmatprep.subr.mxu0 0.0
    %638 = vmatpush1.msra.mxu0 0.0
    %639 = vmatprep.subr.mxu0 0.0
    %640 = vmatpush1.msra.mxu0 0.0
    %641 = vmatprep.subr.mxu0 0.0
    %642 = vmatpush1.msra.mxu0 0.0
    %643 = vmatprep.subr.mxu0 0.0
    %644 = vmatpush1.msra.mxu0 0.0
    %645 = vmatprep.subr.mxu0 0.0
    %646 = vmatpush1.msra.mxu0 0.0
    %647 = vmatprep.subr.mxu0 0.0
    %648 = vmatpush1.msra.mxu0 0.0
    %649 = vmatprep.subr.mxu0 0.0
    %650 = vmatpush1.msra.mxu0 0.0
    %651 = vmatprep.subr.mxu0 0.0
    %652 = vmatpush1.msra.mxu0 0.0
    %653 = vmatprep.subr.mxu0 0.0
    %654 = vmatpush1.msra.mxu0 0.0
    %655 = vmatprep.subr.mxu0 0.0
    %656 = vmatpush1.msra.mxu0 0.0
    %657 = vmatprep.subr.mxu0 0.0
    %658 = vmatpush1.msra.mxu0 0.0
    %659 = vmatprep.mubr.f32.mxu0 0.0
    %660 = vmatmul.mubr.f32.gmra.mrb[0].mxu0 %v590
    %v661 = vpop.f32.mrb[0].mxu0
    %v662 = vadd.f32 %v588, %v661
    %v663 = vpop.f32.mrb[0].mxu0
    %664 = vmatprep.mubr.f32.mxu0 0.0
    %665 = vmatmul.mubr.f32.gmra.mrb[0].mxu0 %v593
    %v666 = vpop.f32.mrb[0].mxu0
    %v667 = vadd.f32 %v588, %v666
    %v668 = vpop.f32.mrb[0].mxu0
    %669 = vdwg.mxu0
    %v670 = vmax.f32 %v662, 0.0
    %v671 = vmax.f32 %v667, 0.0
    %v672 = vlaneseq
    %v673 = vshrl.u32 %v672, 7
    %v674 = vsub.s32 0, %v673
    %v675 = vrot.slane %v167, %v674
    %676 = vmatprep.subr.mxu0 0.0
    %677 = vmatpush1.msra.mxu0 %v148
    %678 = vmatprep.subr.mxu0 0.0
    %679 = vmatpush1.msra.mxu0 %v149
    %680 = vmatprep.subr.mxu0 0.0
    %681 = vmatpush1.msra.mxu0 %v150
    %682 = vmatprep.subr.mxu0 0.0
    %683 = vmatpush1.msra.mxu0 %v151
    %684 = vmatprep.subr.mxu0 0.0
    %685 = vmatpush1.msra.mxu0 %v152
    %686 = vmatprep.subr.mxu0 0.0
    %687 = vmatpush1.msra.mxu0 %v153
    %688 = vmatprep.subr.mxu0 0.0
    %689 = vmatpush1.msra.mxu0 %v154
    %690 = vmatprep.subr.mxu0 0.0
    %691 = vmatpush1.msra.mxu0 %v155
    %692 = vmatprep.subr.mxu0 0.0
    %693 = vmatpush1.msra.mxu0 %v156
    %694 = vmatprep.subr.mxu0 0.0
    %695 = vmatpush1.msra.mxu0 %v157
    %696 = vmatprep.subr.mxu0 0.0
    %697 = vmatpush1.msra.mxu0 %v158
    %698 = vmatprep.subr.mxu0 0.0
    %699 = vmatpush1.msra.mxu0 %v159
    %700 = vmatprep.subr.mxu0 0.0
    %701 = vmatpush1.msra.mxu0 %v160
    %702 = vmatprep.subr.mxu0 0.0
    %703 = vmatpush1.msra.mxu0 %v161
    %704 = vmatprep.subr.mxu0 0.0
    %705 = vmatpush1.msra.mxu0 %v162
    %706 = vmatprep.subr.mxu0 0.0
    %707 = vmatpush1.msra.mxu0 %v163
    %708 = vmatprep.subr.mxu0 0.0
    %709 = vmatpush1.msra.mxu0 0.0
    %710 = vmatprep.subr.mxu0 0.0
    %711 = vmatpush1.msra.mxu0 0.0
    %712 = vmatprep.subr.mxu0 0.0
    %713 = vmatpush1.msra.mxu0 0.0
    %714 = vmatprep.subr.mxu0 0.0
    %715 = vmatpush1.msra.mxu0 0.0
    %716 = vmatprep.subr.mxu0 0.0
    %717 = vmatpush1.msra.mxu0 0.0
    %718 = vmatprep.subr.mxu0 0.0
    %719 = vmatpush1.msra.mxu0 0.0
    %720 = vmatprep.subr.mxu0 0.0
    %721 = vmatpush1.msra.mxu0 0.0
    %722 = vmatprep.subr.mxu0 0.0
    %723 = vmatpush1.msra.mxu0 0.0
    %724 = vmatprep.subr.mxu0 0.0
    %725 = vmatpush1.msra.mxu0 0.0
    %726 = vmatprep.subr.mxu0 0.0
    %727 = vmatpush1.msra.mxu0 0.0
    %728 = vmatprep.subr.mxu0 0.0
    %729 = vmatpush1.msra.mxu0 0.0
    %730 = vmatprep.subr.mxu0 0.0
    %731 = vmatpush1.msra.mxu0 0.0
    %732 = vmatprep.subr.mxu0 0.0
    %733 = vmatpush1.msra.mxu0 0.0
    %734 = vmatprep.subr.mxu0 0.0
    %735 = vmatpush1.msra.mxu0 0.0
    %736 = vmatprep.subr.mxu0 0.0
    %737 = vmatpush1.msra.mxu0 0.0
    %738 = vmatprep.subr.mxu0 0.0
    %739 = vmatpush1.msra.mxu0 0.0
    %740 = vmatprep.mubr.f32.mxu0 0.0
    %741 = vmatmul.mubr.f32.gmra.mrb[0].mxu0 %v670
    %v742 = vpop.f32.mrb[0].mxu0
    %v743 = vadd.f32 %v675, %v742
    %v744 = vpop.f32.mrb[0].mxu0
    %745 = vmatprep.mubr.f32.mxu0 0.0
    %746 = vmatmul.mubr.f32.gmra.mrb[0].mxu0 %v671
    %v747 = vpop.f32.mrb[0].mxu0
    %v748 = vadd.f32 %v675, %v747
    %v749 = vpop.f32.mrb[0].mxu0
    %750 = vdwg.mxu0
    %v751 = vadd.f32 %v583, %v743
    %v752 = vadd.f32 %v584, %v748
    %v753 = vsel %vm176, %v751, 0.0
    %754 = vadd.xlane.f32.xlu0 %v753
    %v755 = vpop.xlane.xlu0 %754
    %v756 = vsel %vm176, %v752, 0.0
    %757 = vadd.xlane.f32.xlu0 %v756
    %v758 = vpop.xlane.xlu0 %757
    %v759 = vmul.f32 %v755, %v552
    %v760 = vmul.f32 %v758, %v552
    %v761 = vsub.f32 %v751, %v759
    %v762 = vsub.f32 %v752, %v760
    %v763 = vmul.f32 %v761, %v761
    %v764 = vmul.f32 %v762, %v762
    %v765 = vsel %vm176, %v763, 0.0
    %766 = vadd.xlane.f32.xlu0 %v765
    %v767 = vpop.xlane.xlu0 %766
    %v768 = vsel %vm176, %v764, 0.0
    %769 = vadd.xlane.f32.xlu0 %v768
    %v770 = vpop.xlane.xlu0 %769
    %v771 = vmul.f32 %v767, %v552
    %v772 = vmul.f32 %v770, %v552
    %v773 = vadd.f32 %v771, 1e-05
    %v774 = vadd.f32 %v772, 1e-05
    %v775 = vrsqrt.pop %v773
    %v776 = vrsqrt.pop %v774
    %v777 = vmul.f32 %v761, %v775
    %v778 = vmul.f32 %v762, %v776
    %v779 = vlaneseq
    %v780 = vshrl.u32 %v779, 7
    %v781 = vsub.s32 0, %v780
    %v782 = vrot.slane %v170, %v781
    %v783 = vmul.f32 %v777, %v782
    %v784 = vmul.f32 %v778, %v782
    %v785 = vlaneseq
    %v786 = vshrl.u32 %v785, 7
    %v787 = vsub.s32 0, %v786
    %v788 = vrot.slane %v171, %v787
    %v789 = vadd.f32 %v783, %v788
    %v790 = vadd.f32 %v784, %v788
    %s791 = scalar_lea.vmem %s1, 64
    %v792 = vld [vmem:[%s791] sm:$0xff]
    %v793 = vld [vmem:[%s791 + $0x10] sm:$0xff]
    %v794 = vld [vmem:[%s791 + $0x20] sm:$0xff]
    %v795 = vld [vmem:[%s791 + $0x30] sm:$0xff]
    %v796 = vld [vmem:[%s791 + $0x8] sm:$0xff]
    %v797 = vld [vmem:[%s791 + $0x18] sm:$0xff]
    %v798 = vld [vmem:[%s791 + $0x28] sm:$0xff]
    %v799 = vld [vmem:[%s791 + $0x38] sm:$0xff]
    %s800 = scalar_lea.vmem %s2, 160
    %v801 = vld [vmem:[%s800] sm:$0xff]
    %v802 = vld [vmem:[%s800 + $0x8] sm:$0xff]
    %v803 = vld [vmem:[%s800 + $0x10] sm:$0xff]
    %v804 = vld [vmem:[%s800 + $0x18] sm:$0xff]
    %v805 = vld [vmem:[%s800 + $0x20] sm:$0xff]
    %v806 = vld [vmem:[%s800 + $0x28] sm:$0xff]
    %v807 = vld [vmem:[%s800 + $0x30] sm:$0xff]
    %v808 = vld [vmem:[%s800 + $0x38] sm:$0xff]
    %v809 = vld [vmem:[%s800 + $0x40] sm:$0xff]
    %v810 = vld [vmem:[%s800 + $0x48] sm:$0xff]
    %v811 = vld [vmem:[%s800 + $0x50] sm:$0xff]
    %v812 = vld [vmem:[%s800 + $0x58] sm:$0xff]
    %v813 = vld [vmem:[%s800 + $0x60] sm:$0xff]
    %v814 = vld [vmem:[%s800 + $0x68] sm:$0xff]
    %v815 = vld [vmem:[%s800 + $0x70] sm:$0xff]
    %v816 = vld [vmem:[%s800 + $0x78] sm:$0xff]
    %v817 = vld [vmem:[%s800 + $0x80] sm:$0xff]
    %v818 = vld [vmem:[%s800 + $0x88] sm:$0xff]
    %v819 = vld [vmem:[%s800 + $0x90] sm:$0xff]
    %v820 = vld [vmem:[%s800 + $0x98] sm:$0xff]
    %v821 = vld [vmem:[%s3 + $0xf0] sm:$0x1]
    %v822 = vld [vmem:[%s3 + $0xf1] sm:$0x1]
    %v823 = vld [vmem:[%s3 + $0xf2] sm:$0x1]
    %v824 = vld [vmem:[%s3 + $0xf3] sm:$0x1]
    %v825 = vld [vmem:[%s3 + $0xf4] sm:$0x1]
    %v826 = vld [vmem:[%s3 + $0xf5] sm:$0x1]
    %v827 = vld [vmem:[%s3 + $0xf6] sm:$0x1]
    %v828 = vld [vmem:[%s3 + $0xf7] sm:$0x1]
    %v829 = vlaneseq
    %v830 = vshrl.u32 %v829, 7
    %v831 = vsub.s32 0, %v830
    %v832 = vrot.slane %v821, %v831
    %v834 = vsel %vm176, %v789, 0
    %v837 = vsel %vm176, %v790, 0
    %839 = vmatprep.subr.mxu0 0.0
    %840 = vmatpush1.msra.mxu0 %v792
    %841 = vmatprep.subr.mxu0 0.0
    %842 = vmatpush1.msra.mxu0 %v793
    %843 = vmatprep.subr.mxu0 0.0
    %844 = vmatpush1.msra.mxu0 %v794
    %845 = vmatprep.subr.mxu0 0.0
    %846 = vmatpush1.msra.mxu0 %v795
    %847 = vmatprep.subr.mxu0 0.0
    %848 = vmatpush1.msra.mxu0 0.0
    %849 = vmatprep.subr.mxu0 0.0
    %850 = vmatpush1.msra.mxu0 0.0
    %851 = vmatprep.subr.mxu0 0.0
    %852 = vmatpush1.msra.mxu0 0.0
    %853 = vmatprep.subr.mxu0 0.0
    %854 = vmatpush1.msra.mxu0 0.0
    %855 = vmatprep.subr.mxu0 0.0
    %856 = vmatpush1.msra.mxu0 0.0
    %857 = vmatprep.subr.mxu0 0.0
    %858 = vmatpush1.msra.mxu0 0.0
    %859 = vmatprep.subr.mxu0 0.0
    %860 = vmatpush1.msra.mxu0 0.0
    %861 = vmatprep.subr.mxu0 0.0
    %862 = vmatpush1.msra.mxu0 0.0
    %863 = vmatprep.subr.mxu0 0.0
    %864 = vmatpush1.msra.mxu0 0.0
    %865 = vmatprep.subr.mxu0 0.0
    %866 = vmatpush1.msra.mxu0 0.0
    %867 = vmatprep.subr.mxu0 0.0
    %868 = vmatpush1.msra.mxu0 0.0
    %869 = vmatprep.subr.mxu0 0.0
    %870 = vmatpush1.msra.mxu0 0.0
    %871 = vmatprep.subr.mxu0 0.0
    %872 = vmatpush1.msra.mxu0 0.0
    %873 = vmatprep.subr.mxu0 0.0
    %874 = vmatpush1.msra.mxu0 0.0
    %875 = vmatprep.subr.mxu0 0.0
    %876 = vmatpush1.msra.mxu0 0.0
    %877 = vmatprep.subr.mxu0 0.0
    %878 = vmatpush1.msra.mxu0 0.0
    %879 = vmatprep.subr.mxu0 0.0
    %880 = vmatpush1.msra.mxu0 0.0
    %881 = vmatprep.subr.mxu0 0.0
    %882 = vmatpush1.msra.mxu0 0.0
    %883 = vmatprep.subr.mxu0 0.0
    %884 = vmatpush1.msra.mxu0 0.0
    %885 = vmatprep.subr.mxu0 0.0
    %886 = vmatpush1.msra.mxu0 0.0
    %887 = vmatprep.subr.mxu0 0.0
    %888 = vmatpush1.msra.mxu0 0.0
    %889 = vmatprep.subr.mxu0 0.0
    %890 = vmatpush1.msra.mxu0 0.0
    %891 = vmatprep.subr.mxu0 0.0
    %892 = vmatpush1.msra.mxu0 0.0
    %893 = vmatprep.subr.mxu0 0.0
    %894 = vmatpush1.msra.mxu0 0.0
    %895 = vmatprep.subr.mxu0 0.0
    %896 = vmatpush1.msra.mxu0 0.0
    %897 = vmatprep.subr.mxu0 0.0
    %898 = vmatpush1.msra.mxu0 0.0
    %899 = vmatprep.subr.mxu0 0.0
    %900 = vmatpush1.msra.mxu0 0.0
    %901 = vmatprep.subr.mxu0 0.0
    %902 = vmatpush1.msra.mxu0 0.0
    %903 = vmatprep.mubr.f32.mxu0 0.0
    %904 = vmatmul.mubr.f32.gmra.mrb[0].mxu0 %v834
    %v905 = vpop.f32.mrb[0].mxu0
    %v906 = vadd.f32 %v832, %v905
    %v907 = vpop.f32.mrb[0].mxu0
    %908 = vmatprep.mubr.f32.mxu0 0.0
    %909 = vmatmul.mubr.f32.gmra.mrb[0].mxu0 %v837
    %v910 = vpop.f32.mrb[0].mxu0
    %v911 = vadd.f32 %v832, %v910
    %v912 = vpop.f32.mrb[0].mxu0
    %913 = vdwg.mxu0
    %v914 = vsub.f32 %v906, %v911
    %916 = vrot.lane.b32.xlu0 %v914, 96
    %v917 = vpop.permute.xlu0 %916
    %v919 = vmul.f32 %v906, %v917
    %v920 = vmul.f32 %v911, %v917
    %v922 = vsel %vm176, %v919, 0
    %v925 = vsel %vm176, %v920, 0
    %927 = vmatprep.subr.mxu0 0.0
    %928 = vmatpush1.msra.mxu0 %v21
    %929 = vmatprep.subr.mxu0 0.0
    %930 = vmatpush1.msra.mxu0 %v22
    %931 = vmatprep.subr.mxu0 0.0
    %932 = vmatpush1.msra.mxu0 %v23
    %933 = vmatprep.subr.mxu0 0.0
    %934 = vmatpush1.msra.mxu0 %v24
    %935 = vmatprep.subr.mxu0 0.0
    %936 = vmatpush1.msra.mxu0 0.0
    %937 = vmatprep.subr.mxu0 0.0
    %938 = vmatpush1.msra.mxu0 0.0
    %939 = vmatprep.subr.mxu0 0.0
    %940 = vmatpush1.msra.mxu0 0.0
    %941 = vmatprep.subr.mxu0 0.0
    %942 = vmatpush1.msra.mxu0 0.0
    %943 = vmatprep.subr.mxu0 0.0
    %944 = vmatpush1.msra.mxu0 0.0
    %945 = vmatprep.subr.mxu0 0.0
    %946 = vmatpush1.msra.mxu0 0.0
    %947 = vmatprep.subr.mxu0 0.0
    %948 = vmatpush1.msra.mxu0 0.0
    %949 = vmatprep.subr.mxu0 0.0
    %950 = vmatpush1.msra.mxu0 0.0
    %951 = vmatprep.subr.mxu0 0.0
    %952 = vmatpush1.msra.mxu0 0.0
    %953 = vmatprep.subr.mxu0 0.0
    %954 = vmatpush1.msra.mxu0 0.0
    %955 = vmatprep.subr.mxu0 0.0
    %956 = vmatpush1.msra.mxu0 0.0
    %957 = vmatprep.subr.mxu0 0.0
    %958 = vmatpush1.msra.mxu0 0.0
    %959 = vmatprep.subr.mxu0 0.0
    %960 = vmatpush1.msra.mxu0 0.0
    %961 = vmatprep.subr.mxu0 0.0
    %962 = vmatpush1.msra.mxu0 0.0
    %963 = vmatprep.subr.mxu0 0.0
    %964 = vmatpush1.msra.mxu0 0.0
    %965 = vmatprep.subr.mxu0 0.0
    %966 = vmatpush1.msra.mxu0 0.0
    %967 = vmatprep.subr.mxu0 0.0
    %968 = vmatpush1.msra.mxu0 0.0
    %969 = vmatprep.subr.mxu0 0.0
    %970 = vmatpush1.msra.mxu0 0.0
    %971 = vmatprep.subr.mxu0 0.0
    %972 = vmatpush1.msra.mxu0 0.0
    %973 = vmatprep.subr.mxu0 0.0
    %974 = vmatpush1.msra.mxu0 0.0
    %975 = vmatprep.subr.mxu0 0.0
    %976 = vmatpush1.msra.mxu0 0.0
    %977 = vmatprep.subr.mxu0 0.0
    %978 = vmatpush1.msra.mxu0 0.0
    %979 = vmatprep.subr.mxu0 0.0
    %980 = vmatpush1.msra.mxu0 0.0
    %981 = vmatprep.subr.mxu0 0.0
    %982 = vmatpush1.msra.mxu0 0.0
    %983 = vmatprep.subr.mxu0 0.0
    %984 = vmatpush1.msra.mxu0 0.0
    %985 = vmatprep.subr.mxu0 0.0
    %986 = vmatpush1.msra.mxu0 0.0
    %987 = vmatprep.subr.mxu0 0.0
    %988 = vmatpush1.msra.mxu0 0.0
    %989 = vmatprep.subr.mxu0 0.0
    %990 = vmatpush1.msra.mxu0 0.0
    %991 = vmatprep.mubr.f32.mxu0 0.0
    %992 = vmatmul.mubr.f32.gmra.mrb[0].mxu0 %v922
    %v993 = vpop.f32.mrb[0].mxu0
    %v994 = vadd.f32 0.0, %v993
    %v995 = vpop.f32.mrb[0].mxu0
    %996 = vmatprep.mubr.f32.mxu0 0.0
    %997 = vmatmul.mubr.f32.gmra.mrb[0].mxu0 %v925
    %v998 = vpop.f32.mrb[0].mxu0
    %v999 = vadd.f32 0.0, %v998
    %v1000 = vpop.f32.mrb[0].mxu0
    %1001 = vdwg.mxu0
    %v1002 = vmul.f32 %v994, 0.5
    %v1003 = vmul.f32 %v999, 0.5
    %v1004 = vtanh.pop %v1002
    %v1005 = vtanh.pop %v1003
    %v1006 = vadd.f32 %v1004, 1.0
    %v1007 = vadd.f32 %v1005, 1.0
    %v1008 = vmul.f32 %v1006, 0.5
    %v1009 = vmul.f32 %v1007, 0.5
    %v1011 = vsel %vm354, %v1008, 0
    %v1014 = vsel %vm354, %v1009, 0
    %1016 = vmatprep.subr.mxu0 0.0
    %1017 = vmatpush1.msra.mxu0 %v363
    %1018 = vmatprep.subr.mxu0 0.0
    %1019 = vmatpush1.msra.mxu0 0.0
    %1020 = vmatprep.subr.mxu0 0.0
    %1021 = vmatpush1.msra.mxu0 0.0
    %1022 = vmatprep.subr.mxu0 0.0
    %1023 = vmatpush1.msra.mxu0 0.0
    %1024 = vmatprep.subr.mxu0 0.0
    %1025 = vmatpush1.msra.mxu0 0.0
    %1026 = vmatprep.subr.mxu0 0.0
    %1027 = vmatpush1.msra.mxu0 0.0
    %1028 = vmatprep.subr.mxu0 0.0
    %1029 = vmatpush1.msra.mxu0 0.0
    %1030 = vmatprep.subr.mxu0 0.0
    %1031 = vmatpush1.msra.mxu0 0.0
    %1032 = vmatprep.subr.mxu0 0.0
    %1033 = vmatpush1.msra.mxu0 0.0
    %1034 = vmatprep.subr.mxu0 0.0
    %1035 = vmatpush1.msra.mxu0 0.0
    %1036 = vmatprep.subr.mxu0 0.0
    %1037 = vmatpush1.msra.mxu0 0.0
    %1038 = vmatprep.subr.mxu0 0.0
    %1039 = vmatpush1.msra.mxu0 0.0
    %1040 = vmatprep.subr.mxu0 0.0
    %1041 = vmatpush1.msra.mxu0 0.0
    %1042 = vmatprep.subr.mxu0 0.0
    %1043 = vmatpush1.msra.mxu0 0.0
    %1044 = vmatprep.subr.mxu0 0.0
    %1045 = vmatpush1.msra.mxu0 0.0
    %1046 = vmatprep.subr.mxu0 0.0
    %1047 = vmatpush1.msra.mxu0 0.0
    %1048 = vmatprep.subr.mxu0 0.0
    %1049 = vmatpush1.msra.mxu0 0.0
    %1050 = vmatprep.subr.mxu0 0.0
    %1051 = vmatpush1.msra.mxu0 0.0
    %1052 = vmatprep.subr.mxu0 0.0
    %1053 = vmatpush1.msra.mxu0 0.0
    %1054 = vmatprep.subr.mxu0 0.0
    %1055 = vmatpush1.msra.mxu0 0.0
    %1056 = vmatprep.subr.mxu0 0.0
    %1057 = vmatpush1.msra.mxu0 0.0
    %1058 = vmatprep.subr.mxu0 0.0
    %1059 = vmatpush1.msra.mxu0 0.0
    %1060 = vmatprep.subr.mxu0 0.0
    %1061 = vmatpush1.msra.mxu0 0.0
    %1062 = vmatprep.subr.mxu0 0.0
    %1063 = vmatpush1.msra.mxu0 0.0
    %1064 = vmatprep.subr.mxu0 0.0
    %1065 = vmatpush1.msra.mxu0 0.0
    %1066 = vmatprep.subr.mxu0 0.0
    %1067 = vmatpush1.msra.mxu0 0.0
    %1068 = vmatprep.subr.mxu0 0.0
    %1069 = vmatpush1.msra.mxu0 0.0
    %1070 = vmatprep.subr.mxu0 0.0
    %1071 = vmatpush1.msra.mxu0 0.0
    %1072 = vmatprep.subr.mxu0 0.0
    %1073 = vmatpush1.msra.mxu0 0.0
    %1074 = vmatprep.subr.mxu0 0.0
    %1075 = vmatpush1.msra.mxu0 0.0
    %1076 = vmatprep.subr.mxu0 0.0
    %1077 = vmatpush1.msra.mxu0 0.0
    %1078 = vmatprep.subr.mxu0 0.0
    %1079 = vmatpush1.msra.mxu0 0.0
    %1080 = vmatprep.mubr.f32.mxu0 0.0
    %1081 = vmatmul.mubr.f32.gmra.mrb[0].mxu0 %v1011
    %v1082 = vpop.f32.mrb[0].mxu0
    %v1083 = vadd.f32 0.0, %v1082
    %v1084 = vpop.f32.mrb[0].mxu0
    %1085 = vmatprep.mubr.f32.mxu0 0.0
    %1086 = vmatmul.mubr.f32.gmra.mrb[0].mxu0 %v1014
    %v1087 = vpop.f32.mrb[0].mxu0
    %v1088 = vadd.f32 0.0, %v1087
    %v1089 = vpop.f32.mrb[0].mxu0
    %1090 = vdwg.mxu0
    %1091 = vrot.lane.b32.xlu0 %v914, 64
    %v1092 = vpop.permute.xlu0 %1091
    %v1094 = vmul.f32 %v1083, %v1092
    %v1095 = vmul.f32 %v1088, %v1092
    %1098 = vrot.lane.b32.xlu0 %v1094, 64
    %v1099 = vpop.permute.xlu0 %1098
    %1100 = vrot.lane.b32.xlu0 %v1095, 64
    %v1101 = vpop.permute.xlu0 %1100
    %v1104 = vadd.f32 %v911, %v1099
    %v1105 = vadd.f32 %v911, %v1101
    %v1106 = vlaneseq
    %v1107 = vshrl.u32 %v1106, 7
    %v1108 = vsub.s32 0, %v1107
    %v1109 = vrot.slane %v822, %v1108
    %1112 = vrot.lane.b32.xlu0 %v1104, 64
    %v1113 = vpop.permute.xlu0 %1112
    %1114 = vrot.lane.b32.xlu0 %v1105, 64
    %v1115 = vpop.permute.xlu0 %1114
    %v1116 = vsel %vm176, %v1113, 0
    %v1118 = vsel %vm176, %v1115, 0
    %1120 = vmatprep.subr.mxu0 0.0
    %1121 = vmatpush1.msra.mxu0 %v801
    %1122 = vmatprep.subr.mxu0 0.0
    %1123 = vmatpush1.msra.mxu0 %v802
    %1124 = vmatprep.subr.mxu0 0.0
    %1125 = vmatpush1.msra.mxu0 %v803
    %1126 = vmatprep.subr.mxu0 0.0
    %1127 = vmatpush1.msra.mxu0 %v804
    %1128 = vmatprep.subr.mxu0 0.0
    %1129 = vmatpush1.msra.mxu0 0.0
    %1130 = vmatprep.subr.mxu0 0.0
    %1131 = vmatpush1.msra.mxu0 0.0
    %1132 = vmatprep.subr.mxu0 0.0
    %1133 = vmatpush1.msra.mxu0 0.0
    %1134 = vmatprep.subr.mxu0 0.0
    %1135 = vmatpush1.msra.mxu0 0.0
    %1136 = vmatprep.subr.mxu0 0.0
    %1137 = vmatpush1.msra.mxu0 0.0
    %1138 = vmatprep.subr.mxu0 0.0
    %1139 = vmatpush1.msra.mxu0 0.0
    %1140 = vmatprep.subr.mxu0 0.0
    %1141 = vmatpush1.msra.mxu0 0.0
    %1142 = vmatprep.subr.mxu0 0.0
    %1143 = vmatpush1.msra.mxu0 0.0
    %1144 = vmatprep.subr.mxu0 0.0
    %1145 = vmatpush1.msra.mxu0 0.0
    %1146 = vmatprep.subr.mxu0 0.0
    %1147 = vmatpush1.msra.mxu0 0.0
    %1148 = vmatprep.subr.mxu0 0.0
    %1149 = vmatpush1.msra.mxu0 0.0
    %1150 = vmatprep.subr.mxu0 0.0
    %1151 = vmatpush1.msra.mxu0 0.0
    %1152 = vmatprep.subr.mxu0 0.0
    %1153 = vmatpush1.msra.mxu0 0.0
    %1154 = vmatprep.subr.mxu0 0.0
    %1155 = vmatpush1.msra.mxu0 0.0
    %1156 = vmatprep.subr.mxu0 0.0
    %1157 = vmatpush1.msra.mxu0 0.0
    %1158 = vmatprep.subr.mxu0 0.0
    %1159 = vmatpush1.msra.mxu0 0.0
    %1160 = vmatprep.subr.mxu0 0.0
    %1161 = vmatpush1.msra.mxu0 0.0
    %1162 = vmatprep.subr.mxu0 0.0
    %1163 = vmatpush1.msra.mxu0 0.0
    %1164 = vmatprep.subr.mxu0 0.0
    %1165 = vmatpush1.msra.mxu0 0.0
    %1166 = vmatprep.subr.mxu0 0.0
    %1167 = vmatpush1.msra.mxu0 0.0
    %1168 = vmatprep.subr.mxu0 0.0
    %1169 = vmatpush1.msra.mxu0 0.0
    %1170 = vmatprep.subr.mxu0 0.0
    %1171 = vmatpush1.msra.mxu0 0.0
    %1172 = vmatprep.subr.mxu0 0.0
    %1173 = vmatpush1.msra.mxu0 0.0
    %1174 = vmatprep.subr.mxu0 0.0
    %1175 = vmatpush1.msra.mxu0 0.0
    %1176 = vmatprep.subr.mxu0 0.0
    %1177 = vmatpush1.msra.mxu0 0.0
    %1178 = vmatprep.subr.mxu0 0.0
    %1179 = vmatpush1.msra.mxu0 0.0
    %1180 = vmatprep.subr.mxu0 0.0
    %1181 = vmatpush1.msra.mxu0 0.0
    %1182 = vmatprep.subr.mxu0 0.0
    %1183 = vmatpush1.msra.mxu0 0.0
    %1184 = vmatprep.mubr.f32.mxu0 0.0
    %1185 = vmatmul.mubr.f32.gmra.mrb[0].mxu0 %v1116
    %v1186 = vpop.f32.mrb[0].mxu0
    %v1187 = vadd.f32 %v1109, %v1186
    %v1188 = vpop.f32.mrb[0].mxu0
    %1189 = vmatprep.mubr.f32.mxu0 0.0
    %1190 = vmatmul.mubr.f32.gmra.mrb[0].mxu0 %v1118
    %v1191 = vpop.f32.mrb[0].mxu0
    %v1192 = vadd.f32 %v1109, %v1191
    %v1193 = vpop.f32.mrb[0].mxu0
    %1194 = vdwg.mxu0
    %v1195 = vadd.f32 %v789, %v1187
    %v1196 = vadd.f32 %v790, %v1192
    %v1197 = vsel %vm176, %v1195, 0.0
    %1198 = vadd.xlane.f32.xlu0 %v1197
    %v1199 = vpop.xlane.xlu0 %1198
    %v1200 = vsel %vm176, %v1196, 0.0
    %1201 = vadd.xlane.f32.xlu0 %v1200
    %v1202 = vpop.xlane.xlu0 %1201
    %v1203 = vmul.f32 %v1199, %v552
    %v1204 = vmul.f32 %v1202, %v552
    %v1205 = vsub.f32 %v1195, %v1203
    %v1206 = vsub.f32 %v1196, %v1204
    %v1207 = vmul.f32 %v1205, %v1205
    %v1208 = vmul.f32 %v1206, %v1206
    %v1209 = vsel %vm176, %v1207, 0.0
    %1210 = vadd.xlane.f32.xlu0 %v1209
    %v1211 = vpop.xlane.xlu0 %1210
    %v1212 = vsel %vm176, %v1208, 0.0
    %1213 = vadd.xlane.f32.xlu0 %v1212
    %v1214 = vpop.xlane.xlu0 %1213
    %v1215 = vmul.f32 %v1211, %v552
    %v1216 = vmul.f32 %v1214, %v552
    %v1217 = vadd.f32 %v1215, 1e-05
    %v1218 = vadd.f32 %v1216, 1e-05
    %v1219 = vrsqrt.pop %v1217
    %v1220 = vrsqrt.pop %v1218
    %v1221 = vmul.f32 %v1205, %v1219
    %v1222 = vmul.f32 %v1206, %v1220
    %v1223 = vlaneseq
    %v1224 = vshrl.u32 %v1223, 7
    %v1225 = vsub.s32 0, %v1224
    %v1226 = vrot.slane %v825, %v1225
    %v1227 = vmul.f32 %v1221, %v1226
    %v1228 = vmul.f32 %v1222, %v1226
    %v1229 = vlaneseq
    %v1230 = vshrl.u32 %v1229, 7
    %v1231 = vsub.s32 0, %v1230
    %v1232 = vrot.slane %v826, %v1231
    %v1233 = vadd.f32 %v1227, %v1232
    %v1234 = vadd.f32 %v1228, %v1232
    %v1235 = vlaneseq
    %v1236 = vshrl.u32 %v1235, 7
    %v1237 = vsub.s32 0, %v1236
    %v1238 = vrot.slane %v823, %v1237
    %v1240 = vsel %vm176, %v1233, 0
    %v1243 = vsel %vm176, %v1234, 0
    %1245 = vmatprep.subr.mxu0 0.0
    %1246 = vmatpush1.msra.mxu0 %v796
    %1247 = vmatprep.subr.mxu0 0.0
    %1248 = vmatpush1.msra.mxu0 %v797
    %1249 = vmatprep.subr.mxu0 0.0
    %1250 = vmatpush1.msra.mxu0 %v798
    %1251 = vmatprep.subr.mxu0 0.0
    %1252 = vmatpush1.msra.mxu0 %v799
    %1253 = vmatprep.subr.mxu0 0.0
    %1254 = vmatpush1.msra.mxu0 0.0
    %1255 = vmatprep.subr.mxu0 0.0
    %1256 = vmatpush1.msra.mxu0 0.0
    %1257 = vmatprep.subr.mxu0 0.0
    %1258 = vmatpush1.msra.mxu0 0.0
    %1259 = vmatprep.subr.mxu0 0.0
    %1260 = vmatpush1.msra.mxu0 0.0
    %1261 = vmatprep.subr.mxu0 0.0
    %1262 = vmatpush1.msra.mxu0 0.0
    %1263 = vmatprep.subr.mxu0 0.0
    %1264 = vmatpush1.msra.mxu0 0.0
    %1265 = vmatprep.subr.mxu0 0.0
    %1266 = vmatpush1.msra.mxu0 0.0
    %1267 = vmatprep.subr.mxu0 0.0
    %1268 = vmatpush1.msra.mxu0 0.0
    %1269 = vmatprep.subr.mxu0 0.0
    %1270 = vmatpush1.msra.mxu0 0.0
    %1271 = vmatprep.subr.mxu0 0.0
    %1272 = vmatpush1.msra.mxu0 0.0
    %1273 = vmatprep.subr.mxu0 0.0
    %1274 = vmatpush1.msra.mxu0 0.0
    %1275 = vmatprep.subr.mxu0 0.0
    %1276 = vmatpush1.msra.mxu0 0.0
    %1277 = vmatprep.subr.mxu0 0.0
    %1278 = vmatpush1.msra.mxu0 0.0
    %1279 = vmatprep.subr.mxu0 0.0
    %1280 = vmatpush1.msra.mxu0 0.0
    %1281 = vmatprep.subr.mxu0 0.0
    %1282 = vmatpush1.msra.mxu0 0.0
    %1283 = vmatprep.subr.mxu0 0.0
    %1284 = vmatpush1.msra.mxu0 0.0
    %1285 = vmatprep.subr.mxu0 0.0
    %1286 = vmatpush1.msra.mxu0 0.0
    %1287 = vmatprep.subr.mxu0 0.0
    %1288 = vmatpush1.msra.mxu0 0.0
    %1289 = vmatprep.subr.mxu0 0.0
    %1290 = vmatpush1.msra.mxu0 0.0
    %1291 = vmatprep.subr.mxu0 0.0
    %1292 = vmatpush1.msra.mxu0 0.0
    %1293 = vmatprep.subr.mxu0 0.0
    %1294 = vmatpush1.msra.mxu0 0.0
    %1295 = vmatprep.subr.mxu0 0.0
    %1296 = vmatpush1.msra.mxu0 0.0
    %1297 = vmatprep.subr.mxu0 0.0
    %1298 = vmatpush1.msra.mxu0 0.0
    %1299 = vmatprep.subr.mxu0 0.0
    %1300 = vmatpush1.msra.mxu0 0.0
    %1301 = vmatprep.subr.mxu0 0.0
    %1302 = vmatpush1.msra.mxu0 0.0
    %1303 = vmatprep.subr.mxu0 0.0
    %1304 = vmatpush1.msra.mxu0 0.0
    %1305 = vmatprep.subr.mxu0 0.0
    %1306 = vmatpush1.msra.mxu0 0.0
    %1307 = vmatprep.subr.mxu0 0.0
    %1308 = vmatpush1.msra.mxu0 0.0
    %1309 = vmatprep.mubr.f32.mxu0 0.0
    %1310 = vmatmul.mubr.f32.gmra.mrb[0].mxu0 %v1240
    %v1311 = vpop.f32.mrb[0].mxu0
    %v1312 = vadd.f32 %v1238, %v1311
    %v1313 = vpop.f32.mrb[0].mxu0
    %1314 = vmatprep.mubr.f32.mxu0 0.0
    %1315 = vmatmul.mubr.f32.gmra.mrb[0].mxu0 %v1243
    %v1316 = vpop.f32.mrb[0].mxu0
    %v1317 = vadd.f32 %v1238, %v1316
    %v1318 = vpop.f32.mrb[0].mxu0
    %1319 = vdwg.mxu0
    %v1320 = vmax.f32 %v1312, 0.0
    %v1321 = vmax.f32 %v1317, 0.0
    %v1322 = vlaneseq
    %v1323 = vshrl.u32 %v1322, 7
    %v1324 = vsub.s32 0, %v1323
    %v1325 = vrot.slane %v824, %v1324
    %1326 = vmatprep.subr.mxu0 0.0
    %1327 = vmatpush1.msra.mxu0 %v805
    %1328 = vmatprep.subr.mxu0 0.0
    %1329 = vmatpush1.msra.mxu0 %v806
    %1330 = vmatprep.subr.mxu0 0.0
    %1331 = vmatpush1.msra.mxu0 %v807
    %1332 = vmatprep.subr.mxu0 0.0
    %1333 = vmatpush1.msra.mxu0 %v808
    %1334 = vmatprep.subr.mxu0 0.0
    %1335 = vmatpush1.msra.mxu0 %v809
    %1336 = vmatprep.subr.mxu0 0.0
    %1337 = vmatpush1.msra.mxu0 %v810
    %1338 = vmatprep.subr.mxu0 0.0
    %1339 = vmatpush1.msra.mxu0 %v811
    %1340 = vmatprep.subr.mxu0 0.0
    %1341 = vmatpush1.msra.mxu0 %v812
    %1342 = vmatprep.subr.mxu0 0.0
    %1343 = vmatpush1.msra.mxu0 %v813
    %1344 = vmatprep.subr.mxu0 0.0
    %1345 = vmatpush1.msra.mxu0 %v814
    %1346 = vmatprep.subr.mxu0 0.0
    %1347 = vmatpush1.msra.mxu0 %v815
    %1348 = vmatprep.subr.mxu0 0.0
    %1349 = vmatpush1.msra.mxu0 %v816
    %1350 = vmatprep.subr.mxu0 0.0
    %1351 = vmatpush1.msra.mxu0 %v817
    %1352 = vmatprep.subr.mxu0 0.0
    %1353 = vmatpush1.msra.mxu0 %v818
    %1354 = vmatprep.subr.mxu0 0.0
    %1355 = vmatpush1.msra.mxu0 %v819
    %1356 = vmatprep.subr.mxu0 0.0
    %1357 = vmatpush1.msra.mxu0 %v820
    %1358 = vmatprep.subr.mxu0 0.0
    %1359 = vmatpush1.msra.mxu0 0.0
    %1360 = vmatprep.subr.mxu0 0.0
    %1361 = vmatpush1.msra.mxu0 0.0
    %1362 = vmatprep.subr.mxu0 0.0
    %1363 = vmatpush1.msra.mxu0 0.0
    %1364 = vmatprep.subr.mxu0 0.0
    %1365 = vmatpush1.msra.mxu0 0.0
    %1366 = vmatprep.subr.mxu0 0.0
    %1367 = vmatpush1.msra.mxu0 0.0
    %1368 = vmatprep.subr.mxu0 0.0
    %1369 = vmatpush1.msra.mxu0 0.0
    %1370 = vmatprep.subr.mxu0 0.0
    %1371 = vmatpush1.msra.mxu0 0.0
    %1372 = vmatprep.subr.mxu0 0.0
    %1373 = vmatpush1.msra.mxu0 0.0
    %1374 = vmatprep.subr.mxu0 0.0
    %1375 = vmatpush1.msra.mxu0 0.0
    %1376 = vmatprep.subr.mxu0 0.0
    %1377 = vmatpush1.msra.mxu0 0.0
    %1378 = vmatprep.subr.mxu0 0.0
    %1379 = vmatpush1.msra.mxu0 0.0
    %1380 = vmatprep.subr.mxu0 0.0
    %1381 = vmatpush1.msra.mxu0 0.0
    %1382 = vmatprep.subr.mxu0 0.0
    %1383 = vmatpush1.msra.mxu0 0.0
    %1384 = vmatprep.subr.mxu0 0.0
    %1385 = vmatpush1.msra.mxu0 0.0
    %1386 = vmatprep.subr.mxu0 0.0
    %1387 = vmatpush1.msra.mxu0 0.0
    %1388 = vmatprep.subr.mxu0 0.0
    %1389 = vmatpush1.msra.mxu0 0.0
    %1390 = vmatprep.mubr.f32.mxu0 0.0
    %1391 = vmatmul.mubr.f32.gmra.mrb[0].mxu0 %v1320
    %v1392 = vpop.f32.mrb[0].mxu0
    %v1393 = vadd.f32 %v1325, %v1392
    %v1394 = vpop.f32.mrb[0].mxu0
    %1395 = vmatprep.mubr.f32.mxu0 0.0
    %1396 = vmatmul.mubr.f32.gmra.mrb[0].mxu0 %v1321
    %v1397 = vpop.f32.mrb[0].mxu0
    %v1398 = vpop.f32.mrb[0].mxu0
    %1399 = vdwg.mxu0
    %v1400 = vadd.f32 %v1233, %v1393
    %v1401 = vsel %vm176, %v1400, 0.0
    %1402 = vadd.xlane.f32.xlu0 %v1401
    %v1403 = vpop.xlane.xlu0 %1402
    %v1404 = vmul.f32 %v1403, %v552
    %v1405 = vsub.f32 %v1400, %v1404
    %v1406 = vmul.f32 %v1405, %v1405
    %v1407 = vsel %vm176, %v1406, 0.0
    %1408 = vadd.xlane.f32.xlu0 %v1407
    %v1409 = vpop.xlane.xlu0 %1408
    %v1410 = vmul.f32 %v1409, %v552
    %v1411 = vadd.f32 %v1410, 1e-05
    %v1412 = vrsqrt.pop %v1411
    %v1413 = vmul.f32 %v1405, %v1412
    %v1414 = vlaneseq
    %v1415 = vshrl.u32 %v1414, 7
    %v1416 = vsub.s32 0, %v1415
    %v1417 = vrot.slane %v827, %v1416
    %v1418 = vmul.f32 %v1413, %v1417
    %v1419 = vlaneseq
    %v1420 = vshrl.u32 %v1419, 7
    %v1421 = vsub.s32 0, %v1420
    %v1422 = vrot.slane %v828, %v1421
    %v1423 = vadd.f32 %v1418, %v1422
    %v1424 = vlaneseq
    %v1425 = vshrl.u32 %v1424, 7
    %v1426 = vsub.s32 0, %v1425
    %v1427 = vrot.slane %v30, %v1426
    %v1429 = vsel %vm176, %v1423, 0
    %1431 = vmatprep.subr.mxu0 0.0
    %1432 = vmatpush1.msra.mxu0 %v26
    %1433 = vmatprep.subr.mxu0 0.0
    %1434 = vmatpush1.msra.mxu0 %v27
    %1435 = vmatprep.subr.mxu0 0.0
    %1436 = vmatpush1.msra.mxu0 %v28
    %1437 = vmatprep.subr.mxu0 0.0
    %1438 = vmatpush1.msra.mxu0 %v29
    %1439 = vmatprep.subr.mxu0 0.0
    %1440 = vmatpush1.msra.mxu0 0.0
    %1441 = vmatprep.subr.mxu0 0.0
    %1442 = vmatpush1.msra.mxu0 0.0
    %1443 = vmatprep.subr.mxu0 0.0
    %1444 = vmatpush1.msra.mxu0 0.0
    %1445 = vmatprep.subr.mxu0 0.0
    %1446 = vmatpush1.msra.mxu0 0.0
    %1447 = vmatprep.subr.mxu0 0.0
    %1448 = vmatpush1.msra.mxu0 0.0
    %1449 = vmatprep.subr.mxu0 0.0
    %1450 = vmatpush1.msra.mxu0 0.0
    %1451 = vmatprep.subr.mxu0 0.0
    %1452 = vmatpush1.msra.mxu0 0.0
    %1453 = vmatprep.subr.mxu0 0.0
    %1454 = vmatpush1.msra.mxu0 0.0
    %1455 = vmatprep.subr.mxu0 0.0
    %1456 = vmatpush1.msra.mxu0 0.0
    %1457 = vmatprep.subr.mxu0 0.0
    %1458 = vmatpush1.msra.mxu0 0.0
    %1459 = vmatprep.subr.mxu0 0.0
    %1460 = vmatpush1.msra.mxu0 0.0
    %1461 = vmatprep.subr.mxu0 0.0
    %1462 = vmatpush1.msra.mxu0 0.0
    %1463 = vmatprep.subr.mxu0 0.0
    %1464 = vmatpush1.msra.mxu0 0.0
    %1465 = vmatprep.subr.mxu0 0.0
    %1466 = vmatpush1.msra.mxu0 0.0
    %1467 = vmatprep.subr.mxu0 0.0
    %1468 = vmatpush1.msra.mxu0 0.0
    %1469 = vmatprep.subr.mxu0 0.0
    %1470 = vmatpush1.msra.mxu0 0.0
    %1471 = vmatprep.subr.mxu0 0.0
    %1472 = vmatpush1.msra.mxu0 0.0
    %1473 = vmatprep.subr.mxu0 0.0
    %1474 = vmatpush1.msra.mxu0 0.0
    %1475 = vmatprep.subr.mxu0 0.0
    %1476 = vmatpush1.msra.mxu0 0.0
    %1477 = vmatprep.subr.mxu0 0.0
    %1478 = vmatpush1.msra.mxu0 0.0
    %1479 = vmatprep.subr.mxu0 0.0
    %1480 = vmatpush1.msra.mxu0 0.0
    %1481 = vmatprep.subr.mxu0 0.0
    %1482 = vmatpush1.msra.mxu0 0.0
    %1483 = vmatprep.subr.mxu0 0.0
    %1484 = vmatpush1.msra.mxu0 0.0
    %1485 = vmatprep.subr.mxu0 0.0
    %1486 = vmatpush1.msra.mxu0 0.0
    %1487 = vmatprep.subr.mxu0 0.0
    %1488 = vmatpush1.msra.mxu0 0.0
    %1489 = vmatprep.subr.mxu0 0.0
    %1490 = vmatpush1.msra.mxu0 0.0
    %1491 = vmatprep.subr.mxu0 0.0
    %1492 = vmatpush1.msra.mxu0 0.0
    %1493 = vmatprep.subr.mxu0 0.0
    %1494 = vmatpush1.msra.mxu0 0.0
    %1495 = vmatprep.mubr.f32.mxu0 0.0
    %1496 = vmatmul.mubr.f32.gmra.mrb[0].mxu0 %v1429
    %v1497 = vpop.f32.mrb[0].mxu0
    %v1498 = vadd.f32 %v1427, %v1497
    %v1499 = vpop.f32.mrb[0].mxu0
    %1500 = vdwg.mxu0
    %v1501 = vmax.f32 %v1498, 0.0
    %v1502 = vand.u32 2147483647, %v1498
    %v1503 = vsub.f32 0.0, %v1502
    %v1504 = vmul.f32 %v1503, 1.442695
    %v1505 = vpow.pop %v1504
    %v1506 = vadd.f32 %v1505, 1.0
    %v1507 = vlog2.pop %v1506
    %v1508 = vmul.f32 %v1507, 0.6931472
    %v1509 = vmul.f32 -0.5, %v1505
    %v1510 = vadd.f32 %v1509, 1.0
    %v1511 = vmul.f32 %v1510, %v1505
    %v1512 = vand.u32 2147483647, %v1505
    %vm1513 = vcmp.lt.f32.partialorder %v1512, 0.0004427343
    %v1514 = vsel %vm1513, %v1511, %v1508
    %v1515 = vadd.f32 %v1501, %v1514
    %v1516 = vlaneseq
    %v1517 = vshrl.u32 %v1516, 7
    %v1518 = vsub.s32 0, %v1517
    %v1519 = vrot.slane %v31, %v1518
    %v1520 = vmul.f32 %v1515, %v1519
    %1521 = vmatprep.subr.mxu0 0.0
    %1522 = vmatpush1.msra.mxu0 %v32
    %1523 = vmatprep.subr.mxu0 0.0
    %1524 = vmatpush1.msra.mxu0 %v33
    %1525 = vmatprep.subr.mxu0 0.0
    %1526 = vmatpush1.msra.mxu0 %v34
    %1527 = vmatprep.subr.mxu0 0.0
    %1528 = vmatpush1.msra.mxu0 %v35
    %1529 = vmatprep.subr.mxu0 0.0
    %1530 = vmatpush1.msra.mxu0 %v36
    %1531 = vmatprep.subr.mxu0 0.0
    %1532 = vmatpush1.msra.mxu0 %v37
    %1533 = vmatprep.subr.mxu0 0.0
    %1534 = vmatpush1.msra.mxu0 %v38
    %1535 = vmatprep.subr.mxu0 0.0
    %1536 = vmatpush1.msra.mxu0 %v39
    %1537 = vmatprep.subr.mxu0 0.0
    %1538 = vmatpush1.msra.mxu0 %v40
    %1539 = vmatprep.subr.mxu0 0.0
    %1540 = vmatpush1.msra.mxu0 %v41
    %1541 = vmatprep.subr.mxu0 0.0
    %1542 = vmatpush1.msra.mxu0 %v42
    %1543 = vmatprep.subr.mxu0 0.0
    %1544 = vmatpush1.msra.mxu0 %v43
    %1545 = vmatprep.subr.mxu0 0.0
    %1546 = vmatpush1.msra.mxu0 %v44
    %1547 = vmatprep.subr.mxu0 0.0
    %1548 = vmatpush1.msra.mxu0 %v45
    %1549 = vmatprep.subr.mxu0 0.0
    %1550 = vmatpush1.msra.mxu0 %v46
    %1551 = vmatprep.subr.mxu0 0.0
    %1552 = vmatpush1.msra.mxu0 %v47
    %1553 = vmatprep.subr.mxu0 0.0
    %1554 = vmatpush1.msra.mxu0 0.0
    %1555 = vmatprep.subr.mxu0 0.0
    %1556 = vmatpush1.msra.mxu0 0.0
    %1557 = vmatprep.subr.mxu0 0.0
    %1558 = vmatpush1.msra.mxu0 0.0
    %1559 = vmatprep.subr.mxu0 0.0
    %1560 = vmatpush1.msra.mxu0 0.0
    %1561 = vmatprep.subr.mxu0 0.0
    %1562 = vmatpush1.msra.mxu0 0.0
    %1563 = vmatprep.subr.mxu0 0.0
    %1564 = vmatpush1.msra.mxu0 0.0
    %1565 = vmatprep.subr.mxu0 0.0
    %1566 = vmatpush1.msra.mxu0 0.0
    %1567 = vmatprep.subr.mxu0 0.0
    %1568 = vmatpush1.msra.mxu0 0.0
    %1569 = vmatprep.subr.mxu0 0.0
    %1570 = vmatpush1.msra.mxu0 0.0
    %1571 = vmatprep.subr.mxu0 0.0
    %1572 = vmatpush1.msra.mxu0 0.0
    %1573 = vmatprep.subr.mxu0 0.0
    %1574 = vmatpush1.msra.mxu0 0.0
    %1575 = vmatprep.subr.mxu0 0.0
    %1576 = vmatpush1.msra.mxu0 0.0
    %1577 = vmatprep.subr.mxu0 0.0
    %1578 = vmatpush1.msra.mxu0 0.0
    %1579 = vmatprep.subr.mxu0 0.0
    %1580 = vmatpush1.msra.mxu0 0.0
    %1581 = vmatprep.subr.mxu0 0.0
    %1582 = vmatpush1.msra.mxu0 0.0
    %1583 = vmatprep.subr.mxu0 0.0
    %1584 = vmatpush1.msra.mxu0 0.0
    %1585 = vmatprep.mubr.f32.mxu0 0.0
    %1586 = vmatmul.mubr.f32.gmra.mrb[0].mxu0 %v1520
    %v1587 = vpop.f32.mrb[0].mxu0
    %v1588 = vadd.f32 0.0, %v1587
    %v1589 = vpop.f32.mrb[0].mxu0
    %1590 = vdwg.mxu0
    %1591 = vst [vmem:[#allocation2] sm:$0xff] %v1588
    // Predicated region
    $region18: #{tpu_custom_call.1} parent=1 // pred_check
      _
    $region19: #{tpu_custom_call.1} parent=1 // pred_check_branch
      %1593 = sbr.rel (0) target = $region21
    $region20: #{tpu_custom_call.1} parent=1 // pred_region
      %s1595 = ssub.s32 128, 128
      %1596 = vsyncadd [#allocation3], %s1595
      %s1598 = sshll.u32 [#allocation2], 4
      %s1599 = int_to_ptr.vmem [resolvable:$true] %s1598
      %1601 = dma.vmem_to_hbm [thread:$0]  %s1599, 128, %s4, [#allocation3]
    $region21: #{tpu_custom_call.1} parent=1 // pred_fallthru
      _
    // Predicated region
    $region22: #{tpu_custom_call.1} parent=1 // pred_check
      _
    $region23: #{tpu_custom_call.1} parent=1 // pred_check_branch
      %1603 = sbr.rel (0) target = $region25
    $region24: #{tpu_custom_call.1} parent=1 // pred_region
      %1604 = dma.done [#allocation3], 128
    $region25: #{tpu_custom_call.1} parent=1 // pred_fallthru
      _
    %1605 = vsyncpa [#allocation3], 1

</llo_original>
